<compile_context>
chip_gen: v7x
topology: tpu7x:2x2x1
jax: 0.10.0
libtpu: 0.0.40
codegen_flags: <defaults>
</compile_context>

<pallas_src>
from functools import partial

import jax
import jax.numpy as jnp
from jax.experimental import pallas as pl
from jax.experimental.pallas import tpu as pltpu

IN_FEATURES = 28 * 28   # 784
HIDDEN = 128
OUT_FEATURES = 10
OUT_PAD = 128           # lane-dense padded output width (multiple of 128)
NEG_BIG = -1e30         # padded-logit bias: exp() -> 0, softmax denom unchanged


def _round_up(n, m):
    return ((n + m - 1) // m) * m


def _default_batch_tile(x_dtype):
    # v5e's 16 MiB default scoped VMEM caps the double-buffered f32 x tile at ~1024 rows;
    # bf16 x (and v6e/v7x's 32 MiB scoped default) comfortably fit 2048 rows
    # (~15 MiB worst case: 2x 6.1 MiB f32 x tile + 2x 1 MiB f32 out + ~0.5 MiB weights).
    try:
        kind = jax.devices()[0].device_kind.lower()
    except Exception:  # pragma: no cover - defensive; keep the safe default
        kind = ""
    if "v5" in kind and x_dtype != jnp.bfloat16:
        return 1024
    return 2048


def mnist_kernel(x_ref, w1_ref, b1_ref, w2_ref, b2_ref, o_ref):
    # x_ref:  (TB, 784)  f32 or bf16 (caller dtype; cast to bf16 here for the MXU)
    # w1_ref: (784, 128) bf16                      b1_ref: (1, 128) f32
    # w2_ref: (128, 128) bf16 (cols 10..127 zero)  b2_ref: (1, 128) f32 (cols 10..127 = NEG_BIG)
    # o_ref:  (TB, 128)  f32 (cols 10..127 come out exactly 0)

    # In-kernel bf16 cast (no-op if the caller already stores x as bf16): avoids a
    # separate wrapper-side convert op and its extra HBM round-trip.
    x = x_ref[...].astype(jnp.bfloat16)

    # fc1 + ReLU: bf16 MXU matmul, f32 accumulate; bias/ReLU on the f32 accumulator.
    h = jnp.dot(x, w1_ref[...], preferred_element_type=jnp.float32) + b1_ref[...]
    h = jnp.maximum(h, 0.0)

    # fc2: cast activations back to bf16 for the MXU, accumulate in f32.
    logits = jnp.dot(h.astype(jnp.bfloat16), w2_ref[...],
                     preferred_element_type=jnp.float32) + b2_ref[...]

    # softmax over dim=1 (stable form; padded columns contribute exp(-1e30) == 0).
    m = jnp.max(logits, axis=1, keepdims=True)
    e = jnp.exp(logits - m)
    denom = jnp.sum(e, axis=1, keepdims=True)
    # EUP approx reciprocal + one Newton step: ~f32 accurate, no VPU divide.
    inv = pl.reciprocal(denom, approx=True)
    inv = inv * (2.0 - denom * inv)
    o_ref[...] = e * inv


@partial(jax.jit, static_argnames=("batch_tile",))
def mnist_forward(x, w1p, b1p, w2p, b2p, *, batch_tile=None):
    """x: (B, 784) f32 or bf16. w1p/w2p bf16, b1p/b2p f32 (from pack_params)."""
    B = x.shape[0]
    if batch_tile is None:
        batch_tile = _default_batch_tile(x.dtype)

    # Shrink the tile for small batches (pad at most to the next multiple of 256), then
    # split a single-step grid in two when possible so both v7x TensorCores get work.
    tile = min(batch_tile, _round_up(B, 256))
    if pl.cdiv(B, tile) == 1 and tile >= 512:
        tile //= 2
    n_tiles = pl.cdiv(B, tile)
    Bp = n_tiles * tile
    if Bp != B:                       # pad batch to a tile multiple; sliced off below
        x = jnp.pad(x, ((0, Bp - B), (0, 0)))

    out = pl.pallas_call(
        mnist_kernel,
        out_shape=jax.ShapeDtypeStruct((Bp, OUT_PAD), jnp.float32),
        grid=(n_tiles,),
        in_specs=[
            # streamed batch tile (double-buffered by the Pallas pipeline), caller dtype
            pl.BlockSpec((tile, IN_FEATURES), lambda i: (i, 0)),
            # weights / biases: constant index_map -> VMEM-resident, no re-fetch
            pl.BlockSpec((IN_FEATURES, HIDDEN), lambda i: (0, 0)),
            pl.BlockSpec((1, HIDDEN), lambda i: (0, 0)),
            pl.BlockSpec((HIDDEN, OUT_PAD), lambda i: (0, 0)),
            pl.BlockSpec((1, OUT_PAD), lambda i: (0, 0)),
        ],
        out_specs=pl.BlockSpec((tile, OUT_PAD), lambda i: (i, 0)),
        compiler_params=pltpu.CompilerParams(
            dimension_semantics=("parallel",),   # lets v7x shard the grid over 2 TCs
        ),
    )(x, w1p, b1p, w2p, b2p)

    # strip batch padding and the lane-dense column padding
    return out[:B, :OUT_FEATURES]


def init_params(key):
    # Mimics nn.Linear-style U(-k, k), k = 1/sqrt(fan_in).
    # TODO(synk): the exact Java Random(123) init sequence of the reference is not
    # reproduced; only the distribution bounds are (forward-pass semantics unchanged).
    k1 = 1.0 / jnp.sqrt(float(IN_FEATURES))
    k2 = 1.0 / jnp.sqrt(float(HIDDEN))
    ks = jax.random.split(key, 4)
    # Stored as [in, out] (transposed w.r.t. PyTorch's [out, in]).
    w1 = jax.random.uniform(ks[0], (IN_FEATURES, HIDDEN), jnp.float32, -k1, k1)
    b1 = jax.random.uniform(ks[1], (1, HIDDEN), jnp.float32, -k1, k1)
    w2 = jax.random.uniform(ks[2], (HIDDEN, OUT_FEATURES), jnp.float32, -k2, k2)
    b2 = jax.random.uniform(ks[3], (1, OUT_FEATURES), jnp.float32, -k2, k2)
    return w1, b1, w2, b2


def pack_params(w1, b1, w2, b2):
    """One-time packing: bf16 weights + lane-dense (128-wide) padded fc2."""
    w1p = w1.astype(jnp.bfloat16)
    b1p = b1.astype(jnp.float32)
    w2p = jnp.zeros((HIDDEN, OUT_PAD), jnp.bfloat16)
    w2p = w2p.at[:, :OUT_FEATURES].set(w2.astype(jnp.bfloat16))
    b2p = jnp.full((1, OUT_PAD), NEG_BIG, jnp.float32)
    b2p = b2p.at[:, :OUT_FEATURES].set(b2.astype(jnp.float32))
    return w1p, b1p, w2p, b2p


def reference_forward(x, w1, b1, w2, b2):
    # Same math as the PyTorch module, with the kernel's bf16 rounding applied
    # to x/w1/h/w2 so the comparison isolates only accumulation-order error.
    xb = x.astype(jnp.bfloat16).astype(jnp.float32)
    w1b = w1.astype(jnp.bfloat16).astype(jnp.float32)
    w2b = w2.astype(jnp.bfloat16).astype(jnp.float32)
    h = jnp.maximum(xb @ w1b + b1, 0.0)
    hb = h.astype(jnp.bfloat16).astype(jnp.float32)
    logits = hb @ w2b + b2
    e = jnp.exp(logits)
    return e / jnp.sum(e, axis=1, keepdims=True)


if __name__ == "__main__":
    key = jax.random.PRNGKey(0)
    kx, kx2, kp = jax.random.split(key, 3)

    w1, b1, w2, b2 = init_params(kp)
    w1p, b1p, w2p, b2p = pack_params(w1, b1, w2, b2)

    # Main check: f32 input path (in-kernel bf16 cast); the single-step grid is
    # auto-split so the batch runs as 2 tiles of 256 (keeps both v7x TCs busy).
    B = 512
    x = jax.random.normal(kx, (B, IN_FEATURES), jnp.float32)
    ref = reference_forward(x, w1, b1, w2, b2)

    out = jax.block_until_ready(mnist_forward(x, w1p, b1p, w2p, b2p))
    assert out.shape == (B, OUT_FEATURES)
    assert jnp.allclose(out, ref, atol=1e-3, rtol=1e-3)
    assert jnp.allclose(jnp.sum(out, axis=1), jnp.ones((B,)), atol=1e-4)

    # Caller-side bf16 storage: zero extra cast traffic; the in-kernel cast is a no-op.
    out_b = jax.block_until_ready(
        mnist_forward(x.astype(jnp.bfloat16), w1p, b1p, w2p, b2p))
    assert out_b.shape == (B, OUT_FEATURES)
    assert jnp.allclose(out_b, ref, atol=1e-3, rtol=1e-3)
    assert jnp.allclose(jnp.sum(out_b, axis=1), jnp.ones((B,)), atol=1e-4)

    # Small, non-tile-multiple batch exercises the wrapper's batch padding path.
    B2 = 32
    x2 = jax.random.normal(kx2, (B2, IN_FEATURES), jnp.float32)
    out2 = jax.block_until_ready(mnist_forward(x2, w1p, b1p, w2p, b2p))
    ref2 = reference_forward(x2, w1, b1, w2, b2)
    assert out2.shape == (B2, OUT_FEATURES)
    assert jnp.allclose(out2, ref2, atol=1e-3, rtol=1e-3)
    assert jnp.allclose(jnp.sum(out2, axis=1), jnp.ones((B2,)), atol=1e-4)

    print("KERNEL_OK")
</pallas_src>

<mosaic_0001>
module attributes {stable_mosaic.version = 11 : i64} {
  func.func @mnist_kernel(%arg0: i32, %arg1: memref<256x784xf32, #tpu.memory_space<vmem>>, %arg2: memref<784x128xbf16, #tpu.memory_space<vmem>>, %arg3: memref<1x128xf32, #tpu.memory_space<vmem>>, %arg4: memref<128x128xbf16, #tpu.memory_space<vmem>>, %arg5: memref<1x128xf32, #tpu.memory_space<vmem>>, %arg6: memref<256x128xf32, #tpu.memory_space<vmem>>) attributes {dimension_semantics = [#tpu.dimension_semantics<parallel>], iteration_bounds = array<i64: 2>, scalar_prefetch = 0 : i64, scratch_operands = 0 : i64, tpu.core_type = #tpu.core_type<tc>, window_params = [{transform_indices = @transform_0, window_bounds = array<i64: 256, 784>}, {pipeline_mode = #tpu.pipeline_mode<synchronous>, transform_indices = @transform_1, window_bounds = array<i64: 784, 128>}, {pipeline_mode = #tpu.pipeline_mode<synchronous>, transform_indices = @transform_2, window_bounds = array<i64: 1, 128>}, {pipeline_mode = #tpu.pipeline_mode<synchronous>, transform_indices = @transform_3, window_bounds = array<i64: 128, 128>}, {pipeline_mode = #tpu.pipeline_mode<synchronous>, transform_indices = @transform_4, window_bounds = array<i64: 1, 128>}, {transform_indices = @transform_5, window_bounds = array<i64: 256, 128>}]} {
    %c0 = arith.constant 0 : index
    %c0_0 = arith.constant 0 : index
    %0 = vector.load %arg1[%c0, %c0_0] : memref<256x784xf32, #tpu.memory_space<vmem>>, vector<256x784xf32>
    %1 = arith.truncf %0 : vector<256x784xf32> to vector<256x784xbf16>
    %c0_1 = arith.constant 0 : index
    %c0_2 = arith.constant 0 : index
    %2 = vector.load %arg2[%c0_1, %c0_2] : memref<784x128xbf16, #tpu.memory_space<vmem>>, vector<784x128xbf16>
    %cst = arith.constant dense<0.000000e+00> : vector<256x128xf32>
    %3 = tpu.matmul %1, %2, %cst {dimension_numbers = #tpu.dot_dimension_numbers<[1], [0], [0], [1], [0, 0, 1, 1], [], []>} : vector<256x784xbf16>, vector<784x128xbf16>, vector<256x128xf32> -> vector<256x128xf32>
    %c0_3 = arith.constant 0 : index
    %c0_4 = arith.constant 0 : index
    %4 = vector.load %arg3[%c0_3, %c0_4] : memref<1x128xf32, #tpu.memory_space<vmem>>, vector<1x128xf32>
    %5 = vector.broadcast %4 : vector<1x128xf32> to vector<256x128xf32>
    %6 = arith.addf %3, %5 : vector<256x128xf32>
    %cst_5 = arith.constant 0.000000e+00 : f32
    %7 = vector.broadcast %cst_5 : f32 to vector<256x128xf32>
    %8 = arith.maximumf %6, %7 : vector<256x128xf32>
    %9 = arith.truncf %8 : vector<256x128xf32> to vector<256x128xbf16>
    %c0_6 = arith.constant 0 : index
    %c0_7 = arith.constant 0 : index
    %10 = vector.load %arg4[%c0_6, %c0_7] : memref<128x128xbf16, #tpu.memory_space<vmem>>, vector<128x128xbf16>
    %cst_8 = arith.constant dense<0.000000e+00> : vector<256x128xf32>
    %11 = tpu.matmul %9, %10, %cst_8 {dimension_numbers = #tpu.dot_dimension_numbers<[1], [0], [0], [1], [0, 0, 1, 1], [], []>} : vector<256x128xbf16>, vector<128x128xbf16>, vector<256x128xf32> -> vector<256x128xf32>
    %c0_9 = arith.constant 0 : index
    %c0_10 = arith.constant 0 : index
    %12 = vector.load %arg5[%c0_9, %c0_10] : memref<1x128xf32, #tpu.memory_space<vmem>>, vector<1x128xf32>
    %13 = vector.broadcast %12 : vector<1x128xf32> to vector<256x128xf32>
    %14 = arith.addf %11, %13 : vector<256x128xf32>
    %cst_11 = arith.constant dense<0xFF800000> : vector<256xf32>
    %15 = vector.multi_reduction <maximumf>, %14, %cst_11 [1] : vector<256x128xf32> to vector<256xf32>
    %16 = vector.shape_cast %15 : vector<256xf32> to vector<256x1xf32>
    %17 = vector.broadcast %16 : vector<256x1xf32> to vector<256x128xf32>
    %18 = arith.subf %14, %17 : vector<256x128xf32>
    %19 = math.exp %18 : vector<256x128xf32>
    %cst_12 = arith.constant dense<0.000000e+00> : vector<256xf32>
    %20 = vector.multi_reduction <add>, %19, %cst_12 [1] : vector<256x128xf32> to vector<256xf32>
    %21 = vector.shape_cast %20 : vector<256xf32> to vector<256x1xf32>
    %22 = tpu.reciprocal %21 {approx = true} : vector<256x1xf32> -> vector<256x1xf32>
    %23 = arith.mulf %21, %22 : vector<256x1xf32>
    %cst_13 = arith.constant 2.000000e+00 : f32
    %24 = vector.broadcast %cst_13 : f32 to vector<256x1xf32>
    %25 = arith.subf %24, %23 : vector<256x1xf32>
    %26 = arith.mulf %22, %25 : vector<256x1xf32>
    %27 = vector.broadcast %26 : vector<256x1xf32> to vector<256x128xf32>
    %28 = arith.mulf %19, %27 : vector<256x128xf32>
    %c0_14 = arith.constant 0 : index
    %c0_15 = arith.constant 0 : index
    %29 = vector.load %arg6[%c0_14, %c0_15] : memref<256x128xf32, #tpu.memory_space<vmem>>, vector<256x128xf32>
    tpu.vector_store %arg6[%c0_14, %c0_15], %28 {strides = array<i32>} : memref<256x128xf32, #tpu.memory_space<vmem>>, vector<256x128xf32>,
    return
  }
  func.func @transform_0(%arg0: i32) -> (i32, i32) {
    %c0_i32 = arith.constant 0 : i32
    %c0_i32_0 = arith.constant 0 : i32
    return %arg0, %c0_i32 : i32, i32
  }
  func.func @transform_1(%arg0: i32) -> (i32, i32) {
    %c0_i32 = arith.constant 0 : i32
    %c0_i32_0 = arith.constant 0 : i32
    %c0_i32_1 = arith.constant 0 : i32
    return %c0_i32, %c0_i32_0 : i32, i32
  }
  func.func @transform_2(%arg0: i32) -> (i32, i32) {
    %c0_i32 = arith.constant 0 : i32
    %c0_i32_0 = arith.constant 0 : i32
    %c0_i32_1 = arith.constant 0 : i32
    return %c0_i32, %c0_i32_0 : i32, i32
  }
  func.func @transform_3(%arg0: i32) -> (i32, i32) {
    %c0_i32 = arith.constant 0 : i32
    %c0_i32_0 = arith.constant 0 : i32
    %c0_i32_1 = arith.constant 0 : i32
    return %c0_i32, %c0_i32_0 : i32, i32
  }
  func.func @transform_4(%arg0: i32) -> (i32, i32) {
    %c0_i32 = arith.constant 0 : i32
    %c0_i32_0 = arith.constant 0 : i32
    %c0_i32_1 = arith.constant 0 : i32
    return %c0_i32, %c0_i32_0 : i32, i32
  }
  func.func @transform_5(%arg0: i32) -> (i32, i32) {
    %c0_i32 = arith.constant 0 : i32
    %c0_i32_0 = arith.constant 0 : i32
    return %arg0, %c0_i32 : i32, i32
  }
}

</mosaic_0001>

<llo_original>
// kernel: mnist_forward.1
$region0: #{mnist_forward.1}
  #allocation0 [shape = 'u32[]', space=smem, size = 0x4, offset = 0x4, fixed_abs, tag = 'smem constant byte address 0x4 - core index']
  #allocation1 [shape = 'u32[144,128]{1,0:T(1,128)}', space=vmem, size = 0x12000, scoped, tag = 'internal scratch']
  %s0 = inlined_call_operand.vmem [shape: f32[512,784], index: 0, kind: input, shape index: {}]
  %s1 = inlined_call_operand.vmem [shape: bf16[784,128], index: 1, kind: input, shape index: {}]
  %s2 = inlined_call_operand.vmem [shape: f32[1,128], index: 2, kind: input, shape index: {}]
  %s3 = inlined_call_operand.vmem [shape: bf16[128,128], index: 3, kind: input, shape index: {}]
  %s4 = inlined_call_operand.vmem [shape: f32[1,128], index: 4, kind: input, shape index: {}]
  %s5 = inlined_call_operand.vmem [shape: f32[512,128], index: 5, kind: output, shape index: {}]
  %s6 = sld [smem:[#allocation0]]
  $region53: #{mnist_forward.1} parent=0
    _
  %s8 = ssub.s32 1, %s6
  %s9 = scalar_select 0, %s8, %s6
  loop: start=0, step=1, limit=4
  $region2: #{mnist_forward.1} parent=0 // loop_pre_header
    _
  $region3: #{mnist_forward.1} parent=0 // loop_header
    %s11 = sphi 0, %s15
    %p12 = scmp.ge.s32.totalorder %s11, 4
    %s21 = sphi 0, %s23
    %s24 = sphi 0, %s21
    %s25 = sphi 0, %s24
    %s41 = sphi 0, %s25
    %s45 = sphi 0, %s45
    %s47 = sphi 0, %s45
    %s48 = sphi 0, %s47
    %s62 = sphi 0, %s48
    %s66 = sphi 0, %s66
    %s68 = sphi 0, %s66
    %s69 = sphi 0, %s68
    %s83 = sphi 0, %s69
    %s87 = sphi 0, %s87
    %s89 = sphi 0, %s87
    %s90 = sphi 0, %s89
    %s104 = sphi 0, %s90
    %s108 = sphi 0, %s108
    %s110 = sphi 0, %s108
    %s111 = sphi 0, %s110
    %s125 = sphi 0, %s111
    %s131 = sphi 0, %s133
    %s134 = sphi 0, %s131
    %s135 = sphi 0, %s134
    %s151 = sphi 0, %s135
  $region4: #{mnist_forward.1} parent=0 // loop_header_branch
    %14 = sbr.rel (%p12) target = $region8
  $region5: #{mnist_forward.1} parent=0 // loop_body
    %s16 = ssub.s32 %s11, 1
    %s17 = ssub.s32 %s11, 2
    %s18 = sadd.s32 %s11, 1
    %s19 = ssub.s32 %s11, %s18
    %p20 = scmp.eq.s32.totalorder %s19, 0
    %s22 = sadd.s32 %s21, 1
    %s23 = scalar_select %p20, %s21, %s22
    %p26 = pneg %p20
    %p27 = scmp.eq.s32.totalorder %s11, 1
    %p28 = por %p26, %p27
    %p29 = scmp.ne.s32.totalorder %s21, %s24
    %p30 = scmp.eq.s32.totalorder %s11, 0
    %p31 = por %p29, %p30
    %p32 = scmp.ne.s32.totalorder %s21, %s24
    %p33 = scmp.eq.s32.totalorder %s16, 1
    %p34 = por %p32, %p33
    %p35 = scmp.ne.s32.totalorder %s24, %s25
    %p36 = scmp.eq.s32.totalorder %s16, 0
    %p37 = por %p35, %p36
    %p38 = scmp.ne.s32.totalorder %s24, %s25
    %p39 = scmp.eq.s32.totalorder %s17, 1
    %p40 = por %p38, %p39
    %p42 = scmp.ne.s32.totalorder %s25, %s41
    %p43 = scmp.eq.s32.totalorder %s17, 0
    %p44 = por %p42, %p43
    %s46 = sadd.s32 %s45, 1
    %p49 = scmp.eq.s32.totalorder %s11, 1
    %p50 = scmp.ne.s32.totalorder %s45, %s47
    %p51 = scmp.eq.s32.totalorder %s11, 0
    %p52 = por %p50, %p51
    %p53 = scmp.ne.s32.totalorder %s45, %s47
    %p54 = scmp.eq.s32.totalorder %s16, 1
    %p55 = por %p53, %p54
    %p56 = scmp.ne.s32.totalorder %s47, %s48
    %p57 = scmp.eq.s32.totalorder %s16, 0
    %p58 = por %p56, %p57
    %p59 = scmp.ne.s32.totalorder %s47, %s48
    %p60 = scmp.eq.s32.totalorder %s17, 1
    %p61 = por %p59, %p60
    %p63 = scmp.ne.s32.totalorder %s48, %s62
    %p64 = scmp.eq.s32.totalorder %s17, 0
    %p65 = por %p63, %p64
    %s67 = sadd.s32 %s66, 1
    %p70 = scmp.eq.s32.totalorder %s11, 1
    %p71 = scmp.ne.s32.totalorder %s66, %s68
    %p72 = scmp.eq.s32.totalorder %s11, 0
    %p73 = por %p71, %p72
    %p74 = scmp.ne.s32.totalorder %s66, %s68
    %p75 = scmp.eq.s32.totalorder %s16, 1
    %p76 = por %p74, %p75
    %p77 = scmp.ne.s32.totalorder %s68, %s69
    %p78 = scmp.eq.s32.totalorder %s16, 0
    %p79 = por %p77, %p78
    %p80 = scmp.ne.s32.totalorder %s68, %s69
    %p81 = scmp.eq.s32.totalorder %s17, 1
    %p82 = por %p80, %p81
    %p84 = scmp.ne.s32.totalorder %s69, %s83
    %p85 = scmp.eq.s32.totalorder %s17, 0
    %p86 = por %p84, %p85
    %s88 = sadd.s32 %s87, 1
    %p91 = scmp.eq.s32.totalorder %s11, 1
    %p92 = scmp.ne.s32.totalorder %s87, %s89
    %p93 = scmp.eq.s32.totalorder %s11, 0
    %p94 = por %p92, %p93
    %p95 = scmp.ne.s32.totalorder %s87, %s89
    %p96 = scmp.eq.s32.totalorder %s16, 1
    %p97 = por %p95, %p96
    %p98 = scmp.ne.s32.totalorder %s89, %s90
    %p99 = scmp.eq.s32.totalorder %s16, 0
    %p100 = por %p98, %p99
    %p101 = scmp.ne.s32.totalorder %s89, %s90
    %p102 = scmp.eq.s32.totalorder %s17, 1
    %p103 = por %p101, %p102
    %p105 = scmp.ne.s32.totalorder %s90, %s104
    %p106 = scmp.eq.s32.totalorder %s17, 0
    %p107 = por %p105, %p106
    %s109 = sadd.s32 %s108, 1
    %p112 = scmp.eq.s32.totalorder %s11, 1
    %p113 = scmp.ne.s32.totalorder %s108, %s110
    %p114 = scmp.eq.s32.totalorder %s11, 0
    %p115 = por %p113, %p114
    %p116 = scmp.ne.s32.totalorder %s108, %s110
    %p117 = scmp.eq.s32.totalorder %s16, 1
    %p118 = por %p116, %p117
    %p119 = scmp.ne.s32.totalorder %s110, %s111
    %p120 = scmp.eq.s32.totalorder %s16, 0
    %p121 = por %p119, %p120
    %p122 = scmp.ne.s32.totalorder %s110, %s111
    %p123 = scmp.eq.s32.totalorder %s17, 1
    %p124 = por %p122, %p123
    %p126 = scmp.ne.s32.totalorder %s111, %s125
    %p127 = scmp.eq.s32.totalorder %s17, 0
    %p128 = por %p126, %p127
    %s129 = ssub.s32 %s11, %s18
    %p130 = scmp.eq.s32.totalorder %s129, 0
    %s132 = sadd.s32 %s131, 1
    %s133 = scalar_select %p130, %s131, %s132
    %p136 = pneg %p130
    %p137 = scmp.eq.s32.totalorder %s11, 1
    %p138 = por %p136, %p137
    %p139 = scmp.ne.s32.totalorder %s131, %s134
    %p140 = scmp.eq.s32.totalorder %s11, 0
    %p141 = por %p139, %p140
    %p142 = scmp.ne.s32.totalorder %s131, %s134
    %p143 = scmp.eq.s32.totalorder %s16, 1
    %p144 = por %p142, %p143
    %p145 = scmp.ne.s32.totalorder %s134, %s135
    %p146 = scmp.eq.s32.totalorder %s16, 0
    %p147 = por %p145, %p146
    %p148 = scmp.ne.s32.totalorder %s134, %s135
    %p149 = scmp.eq.s32.totalorder %s17, 1
    %p150 = por %p148, %p149
    %p152 = scmp.ne.s32.totalorder %s135, %s151
    %p153 = scmp.eq.s32.totalorder %s17, 0
    %p154 = por %p152, %p153
    %p155 = scmp.le.s32.totalorder 1, %s11
    %p156 = scmp.lt.s32.totalorder %s11, 3
    %p157 = pnand %p155, %p156
    %p158 = pneg %p157
    // Predicated region
    $region9: #{mnist_forward.1} parent=5 // pred_check
      _
    $region10: #{mnist_forward.1} parent=5 // pred_check_branch
      %160 = sbr.rel (%p157) target = $region12
    $region11: #{mnist_forward.1} parent=5 // pred_region
      %s161 = ssub.s32 %s11, 1
      // Predicated region
      $region13: #{mnist_forward.1} parent=11 // pred_check
        %p162 = pneg %p58
      $region14: #{mnist_forward.1} parent=11 // pred_check_branch
        %164 = sbr.rel (%p162) target = $region16
      $region15: #{mnist_forward.1} parent=11 // pred_region
        _
      $region16: #{mnist_forward.1} parent=11 // pred_fallthru
        _
      // Predicated region
      $region17: #{mnist_forward.1} parent=11 // pred_check
        %p165 = pneg %p79
      $region18: #{mnist_forward.1} parent=11 // pred_check_branch
        %167 = sbr.rel (%p165) target = $region20
      $region19: #{mnist_forward.1} parent=11 // pred_region
        _
      $region20: #{mnist_forward.1} parent=11 // pred_fallthru
        _
      // Predicated region
      $region21: #{mnist_forward.1} parent=11 // pred_check
        %p168 = pneg %p100
      $region22: #{mnist_forward.1} parent=11 // pred_check_branch
        %170 = sbr.rel (%p168) target = $region24
      $region23: #{mnist_forward.1} parent=11 // pred_region
        _
      $region24: #{mnist_forward.1} parent=11 // pred_fallthru
        _
      // Predicated region
      $region25: #{mnist_forward.1} parent=11 // pred_check
        %p171 = pneg %p121
      $region26: #{mnist_forward.1} parent=11 // pred_check_branch
        %173 = sbr.rel (%p171) target = $region28
      $region27: #{mnist_forward.1} parent=11 // pred_region
        _
      $region28: #{mnist_forward.1} parent=11 // pred_fallthru
        _
    $region12: #{mnist_forward.1} parent=5 // pred_fallthru
      _
    %p174 = scmp.lt.s32.totalorder %s11, 2
    // Predicated region
    $region29: #{mnist_forward.1} parent=5 // pred_check
      %p175 = pneg %p174
    $region30: #{mnist_forward.1} parent=5 // pred_check_branch
      %177 = sbr.rel (%p175) target = $region32
    $region31: #{mnist_forward.1} parent=5 // pred_region
      // Predicated region
      $region33: #{mnist_forward.1} parent=31 // pred_check
        %p178 = pneg %p31
      $region34: #{mnist_forward.1} parent=31 // pred_check_branch
        %180 = sbr.rel (%p178) target = $region36
      $region35: #{mnist_forward.1} parent=31 // pred_region
        %s181 = smul.u32 32, %s11
        %p182 = scmp.lt.s32.totalorder %s181, 63
        %s183 = scalar_select %p182, %s181, 63
        %s184 = smul.addr %s183, 7
        %s185 = smul.addr %s184, 8
        %s186 = scalar_lea.vmem %s0, %s185
        %s187 = smul.u32 32, %s11
      $region36: #{mnist_forward.1} parent=31 // pred_fallthru
        _
    $region32: #{mnist_forward.1} parent=5 // pred_fallthru
      _
    %p188 = scmp.le.s32.totalorder 1, %s11
    %p189 = scmp.lt.s32.totalorder %s11, 3
    %p190 = pnand %p188, %p189
    %p191 = pneg %p190
    // Predicated region
    $region37: #{mnist_forward.1} parent=5 // pred_check
      _
    $region38: #{mnist_forward.1} parent=5 // pred_check_branch
      %193 = sbr.rel (%p190) target = $region40
    $region39: #{mnist_forward.1} parent=5 // pred_region
      %s194 = ssub.s32 %s11, 1
      %s195 = smul.u32 32, %s16
      %p196 = scmp.lt.s32.totalorder %s195, 63
      %s197 = scalar_select %p196, %s195, 63
      %s198 = smul.addr %s197, 7
      %s199 = smul.addr %s198, 8
      %s200 = scalar_lea.vmem %s0, %s199
      %p201 = pneg %p37
      %p202 = pneg %p34
      %p203 = pneg %p58
      %p204 = pneg %p55
      %p205 = pneg %p79
      %p206 = pneg %p76
      %p207 = pneg %p100
      %p208 = pneg %p97
      %p209 = pneg %p121
      %p210 = pneg %p118
      %p211 = pneg %p147
      %p212 = pneg %p144
      %s213 = smul.u32 32, %s16
      %p214 = scmp.lt.s32.totalorder %s213, 63
      %s215 = scalar_select %p214, %s213, 63
      %s216 = smul.addr %s215, 8
      %s217 = scalar_lea.vmem %s5, %s216
      %s218 = smul.u32 32, %s16
      %p219 = scmp.lt.s32.totalorder %s218, 63
      %s220 = scalar_select %p219, %s218, 63
      %s221 = smul.addr %s220, 7
      %s222 = smul.addr %s221, 8
      %s223 = scalar_lea.vmem %s0, %s222
      %s224 = smul.u32 32, %s16
      %s225 = smul.u32 32, %s16
      %p226 = scmp.lt.s32.totalorder %s225, 63
      %s227 = scalar_select %p226, %s225, 63
      %s228 = smul.addr %s227, 8
      %s229 = scalar_lea.vmem %s5, %s228
      %s230 = smul.u32 32, %s16
      %v232 = vld [vmem:[%s223] sm:$0xff]
      %v233 = vld [vmem:[%s223 + $0x8] sm:$0xff]
      %v234 = vld [vmem:[%s223 + $0x10] sm:$0xff]
      %v235 = vld [vmem:[%s223 + $0x18] sm:$0xff]
      %v236 = vld [vmem:[%s223 + $0x20] sm:$0xff]
      %v237 = vld [vmem:[%s223 + $0x28] sm:$0xff]
      %v238 = vld [vmem:[%s223 + $0x30] sm:$0xff]
      %v239 = vld [vmem:[%s223 + $0x38] sm:$0xff]
      %v240 = vld [vmem:[%s223 + $0x40] sm:$0xff]
      %v241 = vld [vmem:[%s223 + $0x48] sm:$0xff]
      %v242 = vld [vmem:[%s223 + $0x50] sm:$0xff]
      %v243 = vld [vmem:[%s223 + $0x58] sm:$0xff]
      %v244 = vld [vmem:[%s223 + $0x60] sm:$0xff]
      %v245 = vld [vmem:[%s223 + $0x68] sm:$0xff]
      %v246 = vld [vmem:[%s223 + $0x70] sm:$0xff]
      %v247 = vld [vmem:[%s223 + $0x78] sm:$0xff]
      %v248 = vld [vmem:[%s223 + $0x80] sm:$0xff]
      %v249 = vld [vmem:[%s223 + $0x88] sm:$0xff]
      %v250 = vld [vmem:[%s223 + $0x90] sm:$0xff]
      %v251 = vld [vmem:[%s223 + $0x98] sm:$0xff]
      %v252 = vld [vmem:[%s223 + $0xa0] sm:$0xff]
      %v253 = vld [vmem:[%s223 + $0xa8] sm:$0xff]
      %v254 = vld [vmem:[%s223 + $0xb0] sm:$0xff]
      %v255 = vld [vmem:[%s223 + $0xb8] sm:$0xff]
      %v256 = vld [vmem:[%s223 + $0xc0] sm:$0xff]
      %v257 = vld [vmem:[%s223 + $0xc8] sm:$0xff]
      %v258 = vld [vmem:[%s223 + $0xd0] sm:$0xff]
      %v259 = vld [vmem:[%s223 + $0xd8] sm:$0xff]
      %v260 = vld [vmem:[%s223 + $0xe0] sm:$0xff]
      %v261 = vld [vmem:[%s223 + $0xe8] sm:$0xff]
      %v262 = vld [vmem:[%s223 + $0xf0] sm:$0xff]
      %v263 = vld [vmem:[%s223 + $0xf8] sm:$0xff]
      %v264 = vld [vmem:[%s223 + $0x100] sm:$0xff]
      %v265 = vld [vmem:[%s223 + $0x108] sm:$0xff]
      %v266 = vld [vmem:[%s223 + $0x110] sm:$0xff]
      %v267 = vld [vmem:[%s223 + $0x118] sm:$0xff]
      %v268 = vld [vmem:[%s223 + $0x120] sm:$0xff]
      %v269 = vld [vmem:[%s223 + $0x128] sm:$0xff]
      %v270 = vld [vmem:[%s223 + $0x130] sm:$0xff]
      %v271 = vld [vmem:[%s223 + $0x138] sm:$0xff]
      %v272 = vld [vmem:[%s223 + $0x140] sm:$0xff]
      %v273 = vld [vmem:[%s223 + $0x148] sm:$0xff]
      %v274 = vld [vmem:[%s223 + $0x150] sm:$0xff]
      %v275 = vld [vmem:[%s223 + $0x158] sm:$0xff]
      %v276 = vld [vmem:[%s223 + $0x160] sm:$0xff]
      %v277 = vld [vmem:[%s223 + $0x168] sm:$0xff]
      %v278 = vld [vmem:[%s223 + $0x170] sm:$0xff]
      %v279 = vld [vmem:[%s223 + $0x178] sm:$0xff]
      %v280 = vld [vmem:[%s223 + $0x180] sm:$0xff]
      %v281 = vld [vmem:[%s223 + $0x188] sm:$0xff]
      %v282 = vld [vmem:[%s223 + $0x190] sm:$0xff]
      %v283 = vld [vmem:[%s223 + $0x198] sm:$0xff]
      %v284 = vld [vmem:[%s223 + $0x1a0] sm:$0xff]
      %v285 = vld [vmem:[%s223 + $0x1a8] sm:$0xff]
      %v286 = vld [vmem:[%s223 + $0x1b0] sm:$0xff]
      %v287 = vld [vmem:[%s223 + $0x1b8] sm:$0xff]
      %v288 = vld [vmem:[%s223 + $0x1c0] sm:$0xff]
      %v289 = vld [vmem:[%s223 + $0x1c8] sm:$0xff]
      %v290 = vld [vmem:[%s223 + $0x1d0] sm:$0xff]
      %v291 = vld [vmem:[%s223 + $0x1d8] sm:$0xff]
      %v292 = vld [vmem:[%s223 + $0x1e0] sm:$0xff]
      %v293 = vld [vmem:[%s223 + $0x1e8] sm:$0xff]
      %v294 = vld [vmem:[%s223 + $0x1f0] sm:$0xff]
      %v295 = vld [vmem:[%s223 + $0x1f8] sm:$0xff]
      %v296 = vld [vmem:[%s223 + $0x200] sm:$0xff]
      %v297 = vld [vmem:[%s223 + $0x208] sm:$0xff]
      %v298 = vld [vmem:[%s223 + $0x210] sm:$0xff]
      %v299 = vld [vmem:[%s223 + $0x218] sm:$0xff]
      %v300 = vld [vmem:[%s223 + $0x220] sm:$0xff]
      %v301 = vld [vmem:[%s223 + $0x228] sm:$0xff]
      %v302 = vld [vmem:[%s223 + $0x230] sm:$0xff]
      %v303 = vld [vmem:[%s223 + $0x238] sm:$0xff]
      %v304 = vld [vmem:[%s223 + $0x240] sm:$0xff]
      %v305 = vld [vmem:[%s223 + $0x248] sm:$0xff]
      %v306 = vld [vmem:[%s223 + $0x250] sm:$0xff]
      %v307 = vld [vmem:[%s223 + $0x258] sm:$0xff]
      %v308 = vld [vmem:[%s223 + $0x260] sm:$0xff]
      %v309 = vld [vmem:[%s223 + $0x268] sm:$0xff]
      %v310 = vld [vmem:[%s223 + $0x270] sm:$0xff]
      %v311 = vld [vmem:[%s223 + $0x278] sm:$0xff]
      %v312 = vld [vmem:[%s223 + $0x280] sm:$0xff]
      %v313 = vld [vmem:[%s223 + $0x288] sm:$0xff]
      %v314 = vld [vmem:[%s223 + $0x290] sm:$0xff]
      %v315 = vld [vmem:[%s223 + $0x298] sm:$0xff]
      %v316 = vld [vmem:[%s223 + $0x2a0] sm:$0xff]
      %v317 = vld [vmem:[%s223 + $0x2a8] sm:$0xff]
      %v318 = vld [vmem:[%s223 + $0x2b0] sm:$0xff]
      %v319 = vld [vmem:[%s223 + $0x2b8] sm:$0xff]
      %v320 = vld [vmem:[%s223 + $0x2c0] sm:$0xff]
      %v321 = vld [vmem:[%s223 + $0x2c8] sm:$0xff]
      %v322 = vld [vmem:[%s223 + $0x2d0] sm:$0xff]
      %v323 = vld [vmem:[%s223 + $0x2d8] sm:$0xff]
      %v324 = vld [vmem:[%s223 + $0x2e0] sm:$0xff]
      %v325 = vld [vmem:[%s223 + $0x2e8] sm:$0xff]
      %v326 = vld [vmem:[%s223 + $0x2f0] sm:$0xff]
      %v327 = vld [vmem:[%s223 + $0x2f8] sm:$0xff]
      %v328 = vld [vmem:[%s223 + $0x300] sm:$0xff]
      %v329 = vld [vmem:[%s223 + $0x308] sm:$0xff]
      %v330 = vld [vmem:[%s223 + $0x310] sm:$0xff]
      %v331 = vld [vmem:[%s223 + $0x318] sm:$0xff]
      %v332 = vld [vmem:[%s223 + $0x320] sm:$0xff]
      %v333 = vld [vmem:[%s223 + $0x328] sm:$0xff]
      %v334 = vld [vmem:[%s223 + $0x330] sm:$0xff]
      %v335 = vld [vmem:[%s223 + $0x338] sm:$0xff]
      %v336 = vld [vmem:[%s223 + $0x340] sm:$0xff]
      %v337 = vld [vmem:[%s223 + $0x348] sm:$0xff]
      %v338 = vld [vmem:[%s223 + $0x350] sm:$0xff]
      %v339 = vld [vmem:[%s223 + $0x358] sm:$0xff]
      %v340 = vld [vmem:[%s223 + $0x360] sm:$0xff]
      %v341 = vld [vmem:[%s223 + $0x368] sm:$0xff]
      %v342 = vld [vmem:[%s223 + $0x370] sm:$0xff]
      %v343 = vld [vmem:[%s223 + $0x378] sm:$0xff]
      %v344 = vld [vmem:[%s223 + $0x380] sm:$0xff]
      %v345 = vld [vmem:[%s223 + $0x388] sm:$0xff]
      %v346 = vld [vmem:[%s223 + $0x390] sm:$0xff]
      %v347 = vld [vmem:[%s223 + $0x398] sm:$0xff]
      %v348 = vld [vmem:[%s223 + $0x3a0] sm:$0xff]
      %v349 = vld [vmem:[%s223 + $0x3a8] sm:$0xff]
      %v350 = vld [vmem:[%s223 + $0x3b0] sm:$0xff]
      %v351 = vld [vmem:[%s223 + $0x3b8] sm:$0xff]
      %v352 = vld [vmem:[%s223 + $0x3c0] sm:$0xff]
      %v353 = vld [vmem:[%s223 + $0x3c8] sm:$0xff]
      %v354 = vld [vmem:[%s223 + $0x3d0] sm:$0xff]
      %v355 = vld [vmem:[%s223 + $0x3d8] sm:$0xff]
      %v356 = vld [vmem:[%s223 + $0x3e0] sm:$0xff]
      %v357 = vld [vmem:[%s223 + $0x3e8] sm:$0xff]
      %v358 = vld [vmem:[%s223 + $0x3f0] sm:$0xff]
      %v359 = vld [vmem:[%s223 + $0x3f8] sm:$0xff]
      %v360 = vld [vmem:[%s223 + $0x400] sm:$0xff]
      %v361 = vld [vmem:[%s223 + $0x408] sm:$0xff]
      %v362 = vld [vmem:[%s223 + $0x410] sm:$0xff]
      %v363 = vld [vmem:[%s223 + $0x418] sm:$0xff]
      %v364 = vld [vmem:[%s223 + $0x420] sm:$0xff]
      %v365 = vld [vmem:[%s223 + $0x428] sm:$0xff]
      %v366 = vld [vmem:[%s223 + $0x430] sm:$0xff]
      %v367 = vld [vmem:[%s223 + $0x438] sm:$0xff]
      %v368 = vld [vmem:[%s223 + $0x440] sm:$0xff]
      %v369 = vld [vmem:[%s223 + $0x448] sm:$0xff]
      %v370 = vld [vmem:[%s223 + $0x450] sm:$0xff]
      %v371 = vld [vmem:[%s223 + $0x458] sm:$0xff]
      %v372 = vld [vmem:[%s223 + $0x460] sm:$0xff]
      %v373 = vld [vmem:[%s223 + $0x468] sm:$0xff]
      %v374 = vld [vmem:[%s223 + $0x470] sm:$0xff]
      %v375 = vld [vmem:[%s223 + $0x478] sm:$0xff]
      %v376 = vld [vmem:[%s223 + $0x480] sm:$0xff]
      %v377 = vld [vmem:[%s223 + $0x488] sm:$0xff]
      %v378 = vld [vmem:[%s223 + $0x490] sm:$0xff]
      %v379 = vld [vmem:[%s223 + $0x498] sm:$0xff]
      %v380 = vld [vmem:[%s223 + $0x4a0] sm:$0xff]
      %v381 = vld [vmem:[%s223 + $0x4a8] sm:$0xff]
      %v382 = vld [vmem:[%s223 + $0x4b0] sm:$0xff]
      %v383 = vld [vmem:[%s223 + $0x4b8] sm:$0xff]
      %v384 = vld [vmem:[%s223 + $0x4c0] sm:$0xff]
      %v385 = vld [vmem:[%s223 + $0x4c8] sm:$0xff]
      %v386 = vld [vmem:[%s223 + $0x4d0] sm:$0xff]
      %v387 = vld [vmem:[%s223 + $0x4d8] sm:$0xff]
      %v388 = vld [vmem:[%s223 + $0x4e0] sm:$0xff]
      %v389 = vld [vmem:[%s223 + $0x4e8] sm:$0xff]
      %v390 = vld [vmem:[%s223 + $0x4f0] sm:$0xff]
      %v391 = vld [vmem:[%s223 + $0x4f8] sm:$0xff]
      %v392 = vld [vmem:[%s223 + $0x500] sm:$0xff]
      %v393 = vld [vmem:[%s223 + $0x508] sm:$0xff]
      %v394 = vld [vmem:[%s223 + $0x510] sm:$0xff]
      %v395 = vld [vmem:[%s223 + $0x518] sm:$0xff]
      %v396 = vld [vmem:[%s223 + $0x520] sm:$0xff]
      %v397 = vld [vmem:[%s223 + $0x528] sm:$0xff]
      %v398 = vld [vmem:[%s223 + $0x530] sm:$0xff]
      %v399 = vld [vmem:[%s223 + $0x538] sm:$0xff]
      %v400 = vld [vmem:[%s223 + $0x540] sm:$0xff]
      %v401 = vld [vmem:[%s223 + $0x548] sm:$0xff]
      %v402 = vld [vmem:[%s223 + $0x550] sm:$0xff]
      %v403 = vld [vmem:[%s223 + $0x558] sm:$0xff]
      %v404 = vld [vmem:[%s223 + $0x560] sm:$0xff]
      %v405 = vld [vmem:[%s223 + $0x568] sm:$0xff]
      %v406 = vld [vmem:[%s223 + $0x570] sm:$0xff]
      %v407 = vld [vmem:[%s223 + $0x578] sm:$0xff]
      %v408 = vld [vmem:[%s223 + $0x580] sm:$0xff]
      %v409 = vld [vmem:[%s223 + $0x588] sm:$0xff]
      %v410 = vld [vmem:[%s223 + $0x590] sm:$0xff]
      %v411 = vld [vmem:[%s223 + $0x598] sm:$0xff]
      %v412 = vld [vmem:[%s223 + $0x5a0] sm:$0xff]
      %v413 = vld [vmem:[%s223 + $0x5a8] sm:$0xff]
      %v414 = vld [vmem:[%s223 + $0x5b0] sm:$0xff]
      %v415 = vld [vmem:[%s223 + $0x5b8] sm:$0xff]
      %v416 = vld [vmem:[%s223 + $0x5c0] sm:$0xff]
      %v417 = vld [vmem:[%s223 + $0x5c8] sm:$0xff]
      %v418 = vld [vmem:[%s223 + $0x5d0] sm:$0xff]
      %v419 = vld [vmem:[%s223 + $0x5d8] sm:$0xff]
      %v420 = vld [vmem:[%s223 + $0x5e0] sm:$0xff]
      %v421 = vld [vmem:[%s223 + $0x5e8] sm:$0xff]
      %v422 = vld [vmem:[%s223 + $0x5f0] sm:$0xff]
      %v423 = vld [vmem:[%s223 + $0x5f8] sm:$0xff]
      %v424 = vld [vmem:[%s223 + $0x600] sm:$0xff]
      %v425 = vld [vmem:[%s223 + $0x608] sm:$0xff]
      %v426 = vld [vmem:[%s223 + $0x610] sm:$0xff]
      %v427 = vld [vmem:[%s223 + $0x618] sm:$0xff]
      %v428 = vld [vmem:[%s223 + $0x620] sm:$0xff]
      %v429 = vld [vmem:[%s223 + $0x628] sm:$0xff]
      %v430 = vld [vmem:[%s223 + $0x630] sm:$0xff]
      %v431 = vld [vmem:[%s223 + $0x638] sm:$0xff]
      %v432 = vld [vmem:[%s223 + $0x640] sm:$0xff]
      %v433 = vld [vmem:[%s223 + $0x648] sm:$0xff]
      %v434 = vld [vmem:[%s223 + $0x650] sm:$0xff]
      %v435 = vld [vmem:[%s223 + $0x658] sm:$0xff]
      %v436 = vld [vmem:[%s223 + $0x660] sm:$0xff]
      %v437 = vld [vmem:[%s223 + $0x668] sm:$0xff]
      %v438 = vld [vmem:[%s223 + $0x670] sm:$0xff]
      %v439 = vld [vmem:[%s223 + $0x678] sm:$0xff]
      %v440 = vld [vmem:[%s223 + $0x680] sm:$0xff]
      %v441 = vld [vmem:[%s223 + $0x688] sm:$0xff]
      %v442 = vld [vmem:[%s223 + $0x690] sm:$0xff]
      %v443 = vld [vmem:[%s223 + $0x698] sm:$0xff]
      %v444 = vld [vmem:[%s223 + $0x6a0] sm:$0xff]
      %v445 = vld [vmem:[%s223 + $0x6a8] sm:$0xff]
      %v446 = vld [vmem:[%s223 + $0x6b0] sm:$0xff]
      %v447 = vld [vmem:[%s223 + $0x6b8] sm:$0xff]
      %v448 = vld [vmem:[%s223 + $0x6c0] sm:$0xff]
      %v449 = vld [vmem:[%s223 + $0x6c8] sm:$0xff]
      %v450 = vld [vmem:[%s223 + $0x6d0] sm:$0xff]
      %v451 = vld [vmem:[%s223 + $0x6d8] sm:$0xff]
      %v452 = vld [vmem:[%s223 + $0x6e0] sm:$0xff]
      %v453 = vld [vmem:[%s223 + $0x6e8] sm:$0xff]
      %v454 = vld [vmem:[%s223 + $0x6f0] sm:$0xff]
      %v455 = vld [vmem:[%s223 + $0x6f8] sm:$0xff]
      %v456 = vpack.c.bf16 %v239, %v232
      %v457 = vpack.c.bf16 %v240, %v233
      %v458 = vpack.c.bf16 %v241, %v234
      %v459 = vpack.c.bf16 %v242, %v235
      %v460 = vpack.c.bf16 %v243, %v236
      %v461 = vpack.c.bf16 %v244, %v237
      %v462 = vpack.c.bf16 %v245, %v238
      %v463 = vpack.c.bf16 %v253, %v246
      %v464 = vpack.c.bf16 %v254, %v247
      %v465 = vpack.c.bf16 %v255, %v248
      %v466 = vpack.c.bf16 %v256, %v249
      %v467 = vpack.c.bf16 %v257, %v250
      %v468 = vpack.c.bf16 %v258, %v251
      %v469 = vpack.c.bf16 %v259, %v252
      %v470 = vpack.c.bf16 %v267, %v260
      %v471 = vpack.c.bf16 %v268, %v261
      %v472 = vpack.c.bf16 %v269, %v262
      %v473 = vpack.c.bf16 %v270, %v263
      %v474 = vpack.c.bf16 %v271, %v264
      %v475 = vpack.c.bf16 %v272, %v265
      %v476 = vpack.c.bf16 %v273, %v266
      %v477 = vpack.c.bf16 %v281, %v274
      %v478 = vpack.c.bf16 %v282, %v275
      %v479 = vpack.c.bf16 %v283, %v276
      %v480 = vpack.c.bf16 %v284, %v277
      %v481 = vpack.c.bf16 %v285, %v278
      %v482 = vpack.c.bf16 %v286, %v279
      %v483 = vpack.c.bf16 %v287, %v280
      %v484 = vpack.c.bf16 %v295, %v288
      %v485 = vpack.c.bf16 %v296, %v289
      %v486 = vpack.c.bf16 %v297, %v290
      %v487 = vpack.c.bf16 %v298, %v291
      %v488 = vpack.c.bf16 %v299, %v292
      %v489 = vpack.c.bf16 %v300, %v293
      %v490 = vpack.c.bf16 %v301, %v294
      %v491 = vpack.c.bf16 %v309, %v302
      %v492 = vpack.c.bf16 %v310, %v303
      %v493 = vpack.c.bf16 %v311, %v304
      %v494 = vpack.c.bf16 %v312, %v305
      %v495 = vpack.c.bf16 %v313, %v306
      %v496 = vpack.c.bf16 %v314, %v307
      %v497 = vpack.c.bf16 %v315, %v308
      %v498 = vpack.c.bf16 %v323, %v316
      %v499 = vpack.c.bf16 %v324, %v317
      %v500 = vpack.c.bf16 %v325, %v318
      %v501 = vpack.c.bf16 %v326, %v319
      %v502 = vpack.c.bf16 %v327, %v320
      %v503 = vpack.c.bf16 %v328, %v321
      %v504 = vpack.c.bf16 %v329, %v322
      %v505 = vpack.c.bf16 %v337, %v330
      %v506 = vpack.c.bf16 %v338, %v331
      %v507 = vpack.c.bf16 %v339, %v332
      %v508 = vpack.c.bf16 %v340, %v333
      %v509 = vpack.c.bf16 %v341, %v334
      %v510 = vpack.c.bf16 %v342, %v335
      %v511 = vpack.c.bf16 %v343, %v336
      %v512 = vpack.c.bf16 %v351, %v344
      %v513 = vpack.c.bf16 %v352, %v345
      %v514 = vpack.c.bf16 %v353, %v346
      %v515 = vpack.c.bf16 %v354, %v347
      %v516 = vpack.c.bf16 %v355, %v348
      %v517 = vpack.c.bf16 %v356, %v349
      %v518 = vpack.c.bf16 %v357, %v350
      %v519 = vpack.c.bf16 %v365, %v358
      %v520 = vpack.c.bf16 %v366, %v359
      %v521 = vpack.c.bf16 %v367, %v360
      %v522 = vpack.c.bf16 %v368, %v361
      %v523 = vpack.c.bf16 %v369, %v362
      %v524 = vpack.c.bf16 %v370, %v363
      %v525 = vpack.c.bf16 %v371, %v364
      %v526 = vpack.c.bf16 %v379, %v372
      %v527 = vpack.c.bf16 %v380, %v373
      %v528 = vpack.c.bf16 %v381, %v374
      %v529 = vpack.c.bf16 %v382, %v375
      %v530 = vpack.c.bf16 %v383, %v376
      %v531 = vpack.c.bf16 %v384, %v377
      %v532 = vpack.c.bf16 %v385, %v378
      %v533 = vpack.c.bf16 %v393, %v386
      %v534 = vpack.c.bf16 %v394, %v387
      %v535 = vpack.c.bf16 %v395, %v388
      %v536 = vpack.c.bf16 %v396, %v389
      %v537 = vpack.c.bf16 %v397, %v390
      %v538 = vpack.c.bf16 %v398, %v391
      %v539 = vpack.c.bf16 %v399, %v392
      %v540 = vpack.c.bf16 %v407, %v400
      %v541 = vpack.c.bf16 %v408, %v401
      %v542 = vpack.c.bf16 %v409, %v402
      %v543 = vpack.c.bf16 %v410, %v403
      %v544 = vpack.c.bf16 %v411, %v404
      %v545 = vpack.c.bf16 %v412, %v405
      %v546 = vpack.c.bf16 %v413, %v406
      %v547 = vpack.c.bf16 %v421, %v414
      %v548 = vpack.c.bf16 %v422, %v415
      %v549 = vpack.c.bf16 %v423, %v416
      %v550 = vpack.c.bf16 %v424, %v417
      %v551 = vpack.c.bf16 %v425, %v418
      %v552 = vpack.c.bf16 %v426, %v419
      %v553 = vpack.c.bf16 %v427, %v420
      %v554 = vpack.c.bf16 %v435, %v428
      %v555 = vpack.c.bf16 %v436, %v429
      %v556 = vpack.c.bf16 %v437, %v430
      %v557 = vpack.c.bf16 %v438, %v431
      %v558 = vpack.c.bf16 %v439, %v432
      %v559 = vpack.c.bf16 %v440, %v433
      %v560 = vpack.c.bf16 %v441, %v434
      %v561 = vpack.c.bf16 %v449, %v442
      %v562 = vpack.c.bf16 %v450, %v443
      %v563 = vpack.c.bf16 %v451, %v444
      %v564 = vpack.c.bf16 %v452, %v445
      %v565 = vpack.c.bf16 %v453, %v446
      %v566 = vpack.c.bf16 %v454, %v447
      %v567 = vpack.c.bf16 %v455, %v448
      %v568 = vld [vmem:[%s1] sm:$0xf]
      %v569 = vld [vmem:[%s1 + $0x4] sm:$0xf]
      %v570 = vld [vmem:[%s1 + $0x8] sm:$0xf]
      %v571 = vld [vmem:[%s1 + $0xc] sm:$0xf]
      %v572 = vld [vmem:[%s1 + $0x10] sm:$0xf]
      %v573 = vld [vmem:[%s1 + $0x14] sm:$0xf]
      %v574 = vld [vmem:[%s1 + $0x18] sm:$0xf]
      %v575 = vld [vmem:[%s1 + $0x1c] sm:$0xf]
      %v576 = vld [vmem:[%s1 + $0x20] sm:$0xf]
      %v577 = vld [vmem:[%s1 + $0x24] sm:$0xf]
      %v578 = vld [vmem:[%s1 + $0x28] sm:$0xf]
      %v579 = vld [vmem:[%s1 + $0x2c] sm:$0xf]
      %v580 = vld [vmem:[%s1 + $0x30] sm:$0xf]
      %v581 = vld [vmem:[%s1 + $0x34] sm:$0xf]
      %v582 = vld [vmem:[%s1 + $0x38] sm:$0xf]
      %v583 = vld [vmem:[%s1 + $0x3c] sm:$0xf]
      %v584 = vld [vmem:[%s1 + $0x40] sm:$0xf]
      %v585 = vld [vmem:[%s1 + $0x44] sm:$0xf]
      %v586 = vld [vmem:[%s1 + $0x48] sm:$0xf]
      %v587 = vld [vmem:[%s1 + $0x4c] sm:$0xf]
      %v588 = vld [vmem:[%s1 + $0x50] sm:$0xf]
      %v589 = vld [vmem:[%s1 + $0x54] sm:$0xf]
      %v590 = vld [vmem:[%s1 + $0x58] sm:$0xf]
      %v591 = vld [vmem:[%s1 + $0x5c] sm:$0xf]
      %v592 = vld [vmem:[%s1 + $0x60] sm:$0xf]
      %v593 = vld [vmem:[%s1 + $0x64] sm:$0xf]
      %v594 = vld [vmem:[%s1 + $0x68] sm:$0xf]
      %v595 = vld [vmem:[%s1 + $0x6c] sm:$0xf]
      %v596 = vld [vmem:[%s1 + $0x70] sm:$0xf]
      %v597 = vld [vmem:[%s1 + $0x74] sm:$0xf]
      %v598 = vld [vmem:[%s1 + $0x78] sm:$0xf]
      %v599 = vld [vmem:[%s1 + $0x7c] sm:$0xf]
      %v600 = vld [vmem:[%s1 + $0x80] sm:$0xf]
      %v601 = vld [vmem:[%s1 + $0x84] sm:$0xf]
      %v602 = vld [vmem:[%s1 + $0x88] sm:$0xf]
      %v603 = vld [vmem:[%s1 + $0x8c] sm:$0xf]
      %v604 = vld [vmem:[%s1 + $0x90] sm:$0xf]
      %v605 = vld [vmem:[%s1 + $0x94] sm:$0xf]
      %v606 = vld [vmem:[%s1 + $0x98] sm:$0xf]
      %v607 = vld [vmem:[%s1 + $0x9c] sm:$0xf]
      %v608 = vld [vmem:[%s1 + $0xa0] sm:$0xf]
      %v609 = vld [vmem:[%s1 + $0xa4] sm:$0xf]
      %v610 = vld [vmem:[%s1 + $0xa8] sm:$0xf]
      %v611 = vld [vmem:[%s1 + $0xac] sm:$0xf]
      %v612 = vld [vmem:[%s1 + $0xb0] sm:$0xf]
      %v613 = vld [vmem:[%s1 + $0xb4] sm:$0xf]
      %v614 = vld [vmem:[%s1 + $0xb8] sm:$0xf]
      %v615 = vld [vmem:[%s1 + $0xbc] sm:$0xf]
      %v616 = vld [vmem:[%s1 + $0xc0] sm:$0xf]
      %v617 = vld [vmem:[%s1 + $0xc4] sm:$0xf]
      %v618 = vld [vmem:[%s1 + $0xc8] sm:$0xf]
      %v619 = vld [vmem:[%s1 + $0xcc] sm:$0xf]
      %v620 = vld [vmem:[%s1 + $0xd0] sm:$0xf]
      %v621 = vld [vmem:[%s1 + $0xd4] sm:$0xf]
      %v622 = vld [vmem:[%s1 + $0xd8] sm:$0xf]
      %v623 = vld [vmem:[%s1 + $0xdc] sm:$0xf]
      %v624 = vld [vmem:[%s1 + $0xe0] sm:$0xf]
      %v625 = vld [vmem:[%s1 + $0xe4] sm:$0xf]
      %v626 = vld [vmem:[%s1 + $0xe8] sm:$0xf]
      %v627 = vld [vmem:[%s1 + $0xec] sm:$0xf]
      %v628 = vld [vmem:[%s1 + $0xf0] sm:$0xf]
      %v629 = vld [vmem:[%s1 + $0xf4] sm:$0xf]
      %v630 = vld [vmem:[%s1 + $0xf8] sm:$0xf]
      %v631 = vld [vmem:[%s1 + $0xfc] sm:$0xf]
      %v632 = vld [vmem:[%s1 + $0x100] sm:$0xf]
      %v633 = vld [vmem:[%s1 + $0x104] sm:$0xf]
      %v634 = vld [vmem:[%s1 + $0x108] sm:$0xf]
      %v635 = vld [vmem:[%s1 + $0x10c] sm:$0xf]
      %v636 = vld [vmem:[%s1 + $0x110] sm:$0xf]
      %v637 = vld [vmem:[%s1 + $0x114] sm:$0xf]
      %v638 = vld [vmem:[%s1 + $0x118] sm:$0xf]
      %v639 = vld [vmem:[%s1 + $0x11c] sm:$0xf]
      %v640 = vld [vmem:[%s1 + $0x120] sm:$0xf]
      %v641 = vld [vmem:[%s1 + $0x124] sm:$0xf]
      %v642 = vld [vmem:[%s1 + $0x128] sm:$0xf]
      %v643 = vld [vmem:[%s1 + $0x12c] sm:$0xf]
      %v644 = vld [vmem:[%s1 + $0x130] sm:$0xf]
      %v645 = vld [vmem:[%s1 + $0x134] sm:$0xf]
      %v646 = vld [vmem:[%s1 + $0x138] sm:$0xf]
      %v647 = vld [vmem:[%s1 + $0x13c] sm:$0xf]
      %v648 = vld [vmem:[%s1 + $0x140] sm:$0xf]
      %v649 = vld [vmem:[%s1 + $0x144] sm:$0xf]
      %v650 = vld [vmem:[%s1 + $0x148] sm:$0xf]
      %v651 = vld [vmem:[%s1 + $0x14c] sm:$0xf]
      %v652 = vld [vmem:[%s1 + $0x150] sm:$0xf]
      %v653 = vld [vmem:[%s1 + $0x154] sm:$0xf]
      %v654 = vld [vmem:[%s1 + $0x158] sm:$0xf]
      %v655 = vld [vmem:[%s1 + $0x15c] sm:$0xf]
      %v656 = vld [vmem:[%s1 + $0x160] sm:$0xf]
      %v657 = vld [vmem:[%s1 + $0x164] sm:$0xf]
      %v658 = vld [vmem:[%s1 + $0x168] sm:$0xf]
      %v659 = vld [vmem:[%s1 + $0x16c] sm:$0xf]
      %v660 = vld [vmem:[%s1 + $0x170] sm:$0xf]
      %v661 = vld [vmem:[%s1 + $0x174] sm:$0xf]
      %v662 = vld [vmem:[%s1 + $0x178] sm:$0xf]
      %v663 = vld [vmem:[%s1 + $0x17c] sm:$0xf]
      %v664 = vld [vmem:[%s1 + $0x180] sm:$0xf]
      %v665 = vld [vmem:[%s1 + $0x184] sm:$0xf]
      %v666 = vld [vmem:[%s2] sm:$0x1]
      %v668 = vlaneseq
      %v669 = vshrl.u32 %v668, 7
      %v670 = vsub.s32 0, %v669
      %v671 = vrot.slane %v666, %v670
      %v771 = vunpack.c.l.b16 %v568
      %v772 = vunpack.c.l.b16 %v569
      %v773 = vunpack.c.l.b16 %v570
      %v774 = vunpack.c.l.b16 %v571
      %v775 = vunpack.c.l.b16 %v572
      %v776 = vunpack.c.l.b16 %v573
      %v777 = vunpack.c.l.b16 %v574
      %v778 = vunpack.c.l.b16 %v575
      %v779 = vunpack.c.l.b16 %v576
      %v780 = vunpack.c.l.b16 %v577
      %v781 = vunpack.c.l.b16 %v578
      %v782 = vunpack.c.l.b16 %v579
      %v783 = vunpack.c.l.b16 %v580
      %v784 = vunpack.c.l.b16 %v581
      %v785 = vunpack.c.l.b16 %v582
      %v786 = vunpack.c.l.b16 %v583
      %v787 = vunpack.c.l.b16 %v584
      %v788 = vunpack.c.l.b16 %v585
      %v789 = vunpack.c.l.b16 %v586
      %v790 = vunpack.c.l.b16 %v587
      %v791 = vunpack.c.l.b16 %v588
      %v792 = vunpack.c.l.b16 %v589
      %v793 = vunpack.c.l.b16 %v590
      %v794 = vunpack.c.l.b16 %v591
      %v795 = vunpack.c.l.b16 %v592
      %v796 = vunpack.c.l.b16 %v593
      %v797 = vunpack.c.l.b16 %v594
      %v798 = vunpack.c.l.b16 %v595
      %v799 = vunpack.c.l.b16 %v596
      %v800 = vunpack.c.l.b16 %v597
      %v801 = vunpack.c.l.b16 %v598
      %v802 = vunpack.c.l.b16 %v599
      %v803 = vunpack.c.l.b16 %v600
      %v804 = vunpack.c.l.b16 %v601
      %v805 = vunpack.c.l.b16 %v602
      %v806 = vunpack.c.l.b16 %v603
      %v807 = vunpack.c.l.b16 %v604
      %v808 = vunpack.c.l.b16 %v605
      %v809 = vunpack.c.l.b16 %v606
      %v810 = vunpack.c.l.b16 %v607
      %v811 = vunpack.c.l.b16 %v608
      %v812 = vunpack.c.l.b16 %v609
      %v813 = vunpack.c.l.b16 %v610
      %v814 = vunpack.c.l.b16 %v611
      %v815 = vunpack.c.l.b16 %v612
      %v816 = vunpack.c.l.b16 %v613
      %v817 = vunpack.c.l.b16 %v614
      %v818 = vunpack.c.l.b16 %v615
      %v819 = vunpack.c.l.b16 %v616
      %v820 = vunpack.c.l.b16 %v617
      %v821 = vunpack.c.l.b16 %v618
      %v822 = vunpack.c.l.b16 %v619
      %v823 = vunpack.c.l.b16 %v620
      %v824 = vunpack.c.l.b16 %v621
      %v825 = vunpack.c.l.b16 %v622
      %v826 = vunpack.c.l.b16 %v623
      %v827 = vunpack.c.l.b16 %v624
      %v828 = vunpack.c.l.b16 %v625
      %v829 = vunpack.c.l.b16 %v626
      %v830 = vunpack.c.l.b16 %v627
      %v831 = vunpack.c.l.b16 %v628
      %v832 = vunpack.c.l.b16 %v629
      %v833 = vunpack.c.l.b16 %v630
      %v834 = vunpack.c.l.b16 %v631
      %v835 = vunpack.c.l.b16 %v632
      %v836 = vunpack.c.l.b16 %v633
      %v837 = vunpack.c.l.b16 %v634
      %v838 = vunpack.c.l.b16 %v635
      %v839 = vunpack.c.l.b16 %v636
      %v840 = vunpack.c.l.b16 %v637
      %v841 = vunpack.c.l.b16 %v638
      %v842 = vunpack.c.l.b16 %v639
      %v843 = vunpack.c.l.b16 %v640
      %v844 = vunpack.c.l.b16 %v641
      %v845 = vunpack.c.l.b16 %v642
      %v846 = vunpack.c.l.b16 %v643
      %v847 = vunpack.c.l.b16 %v644
      %v848 = vunpack.c.l.b16 %v645
      %v849 = vunpack.c.l.b16 %v646
      %v850 = vunpack.c.l.b16 %v647
      %v851 = vunpack.c.l.b16 %v648
      %v852 = vunpack.c.l.b16 %v649
      %v853 = vunpack.c.l.b16 %v650
      %v854 = vunpack.c.l.b16 %v651
      %v855 = vunpack.c.l.b16 %v652
      %v856 = vunpack.c.l.b16 %v653
      %v857 = vunpack.c.l.b16 %v654
      %v858 = vunpack.c.l.b16 %v655
      %v859 = vunpack.c.l.b16 %v656
      %v860 = vunpack.c.l.b16 %v657
      %v861 = vunpack.c.l.b16 %v658
      %v862 = vunpack.c.l.b16 %v659
      %v863 = vunpack.c.l.b16 %v660
      %v864 = vunpack.c.l.b16 %v661
      %v865 = vunpack.c.l.b16 %v662
      %v866 = vunpack.c.l.b16 %v663
      %v867 = vunpack.c.l.b16 %v664
      %v868 = vunpack.c.l.b16 %v665
      %v869 = vpack.c.b16 %v772, %v771
      %v870 = vpack.c.b16 %v774, %v773
      %v871 = vpack.c.b16 %v776, %v775
      %v872 = vpack.c.b16 %v778, %v777
      %v873 = vpack.c.b16 %v780, %v779
      %v874 = vpack.c.b16 %v782, %v781
      %v875 = vpack.c.b16 %v784, %v783
      %v876 = vpack.c.b16 %v786, %v785
      %v877 = vpack.c.b16 %v788, %v787
      %v878 = vpack.c.b16 %v790, %v789
      %v879 = vpack.c.b16 %v792, %v791
      %v880 = vpack.c.b16 %v794, %v793
      %v881 = vpack.c.b16 %v796, %v795
      %v882 = vpack.c.b16 %v798, %v797
      %v883 = vpack.c.b16 %v800, %v799
      %v884 = vpack.c.b16 %v802, %v801
      %v885 = vpack.c.b16 %v804, %v803
      %v886 = vpack.c.b16 %v806, %v805
      %v887 = vpack.c.b16 %v808, %v807
      %v888 = vpack.c.b16 %v810, %v809
      %v889 = vpack.c.b16 %v812, %v811
      %v890 = vpack.c.b16 %v814, %v813
      %v891 = vpack.c.b16 %v816, %v815
      %v892 = vpack.c.b16 %v818, %v817
      %v893 = vpack.c.b16 %v820, %v819
      %v894 = vpack.c.b16 %v822, %v821
      %v895 = vpack.c.b16 %v824, %v823
      %v896 = vpack.c.b16 %v826, %v825
      %v897 = vpack.c.b16 %v828, %v827
      %v898 = vpack.c.b16 %v830, %v829
      %v899 = vpack.c.b16 %v832, %v831
      %v900 = vpack.c.b16 %v834, %v833
      %v901 = vpack.c.b16 %v836, %v835
      %v902 = vpack.c.b16 %v838, %v837
      %v903 = vpack.c.b16 %v840, %v839
      %v904 = vpack.c.b16 %v842, %v841
      %v905 = vpack.c.b16 %v844, %v843
      %v906 = vpack.c.b16 %v846, %v845
      %v907 = vpack.c.b16 %v848, %v847
      %v908 = vpack.c.b16 %v850, %v849
      %v909 = vpack.c.b16 %v852, %v851
      %v910 = vpack.c.b16 %v854, %v853
      %v911 = vpack.c.b16 %v856, %v855
      %v912 = vpack.c.b16 %v858, %v857
      %v913 = vpack.c.b16 %v860, %v859
      %v914 = vpack.c.b16 %v862, %v861
      %v915 = vpack.c.b16 %v864, %v863
      %v916 = vpack.c.b16 %v866, %v865
      %v917 = vpack.c.b16 %v868, %v867
      %vm967 = vcmask 130048
      %v969 = vsel %vm967, %v462, 0
      %v972 = vsel %vm967, %v469, 0
      %v975 = vsel %vm967, %v476, 0
      %v978 = vsel %vm967, %v483, 0
      %v981 = vsel %vm967, %v490, 0
      %v984 = vsel %vm967, %v497, 0
      %v987 = vsel %vm967, %v504, 0
      %v990 = vsel %vm967, %v511, 0
      %v993 = vsel %vm967, %v518, 0
      %v996 = vsel %vm967, %v525, 0
      %v999 = vsel %vm967, %v532, 0
      %v1002 = vsel %vm967, %v539, 0
      %v1005 = vsel %vm967, %v546, 0
      %v1008 = vsel %vm967, %v553, 0
      %v1011 = vsel %vm967, %v560, 0
      %v1014 = vsel %vm967, %v567, 0
      %1016 = vmatprep.subr.bf16.mxu0 0
      %1017 = vmatpush1.bf16.msra.mxu0 %v869
      %1018 = vmatprep.subr.bf16.mxu0 0
      %1019 = vmatpush1.bf16.msra.mxu0 %v870
      %1020 = vmatprep.subr.bf16.mxu0 0
      %1021 = vmatpush1.bf16.msra.mxu0 %v871
      %1022 = vmatprep.subr.bf16.mxu0 0
      %1023 = vmatpush1.bf16.msra.mxu0 %v872
      %1024 = vmatprep.subr.bf16.mxu0 0
      %1025 = vmatpush1.bf16.msra.mxu0 %v873
      %1026 = vmatprep.subr.bf16.mxu0 0
      %1027 = vmatpush1.bf16.msra.mxu0 %v874
      %1028 = vmatprep.subr.bf16.mxu0 0
      %1029 = vmatpush1.bf16.msra.mxu0 %v875
      %1030 = vmatprep.subr.bf16.mxu0 0
      %1031 = vmatpush1.bf16.msra.mxu0 %v876
      %1032 = vmatprep.subr.bf16.mxu0 0
      %1033 = vmatpush1.bf16.msra.mxu0 %v877
      %1034 = vmatprep.subr.bf16.mxu0 0
      %1035 = vmatpush1.bf16.msra.mxu0 %v878
      %1036 = vmatprep.subr.bf16.mxu0 0
      %1037 = vmatpush1.bf16.msra.mxu0 %v879
      %1038 = vmatprep.subr.bf16.mxu0 0
      %1039 = vmatpush1.bf16.msra.mxu0 %v880
      %1040 = vmatprep.subr.bf16.mxu0 0
      %1041 = vmatpush1.bf16.msra.mxu0 %v881
      %1042 = vmatprep.subr.bf16.mxu0 0
      %1043 = vmatpush1.bf16.msra.mxu0 %v882
      %1044 = vmatprep.subr.bf16.mxu0 0
      %1045 = vmatpush1.bf16.msra.mxu0 %v883
      %1046 = vmatprep.subr.bf16.mxu0 0
      %1047 = vmatpush1.bf16.msra.mxu0 %v884
      %1048 = vmatprep.mubr.bf16.mxu0 %v457
      %1049 = vmatmul.mubr.bf16.gmra.mrb[0].mxu0 %v456
      %v1050 = vpop.f32.mrb[0].mxu0
      %v1051 = vadd.f32 %v671, %v1050
      %v1052 = vpop.f32.mrb[0].mxu0
      %v1053 = vpop.f32.mrb[0].mxu0
      %v1054 = vadd.f32 %v671, %v1053
      %v1055 = vpop.f32.mrb[0].mxu0
      %1056 = vmatprep.mubr.bf16.mxu0 %v464
      %1057 = vmatmul.mubr.bf16.gmra.mrb[0].mxu0 %v463
      %v1058 = vpop.f32.mrb[0].mxu0
      %v1059 = vadd.f32 %v671, %v1058
      %v1060 = vpop.f32.mrb[0].mxu0
      %v1061 = vpop.f32.mrb[0].mxu0
      %v1062 = vadd.f32 %v671, %v1061
      %v1063 = vpop.f32.mrb[0].mxu0
      %1064 = vmatprep.mubr.bf16.mxu0 %v471
      %1065 = vmatmul.mubr.bf16.gmra.mrb[0].mxu0 %v470
      %v1066 = vpop.f32.mrb[0].mxu0
      %v1067 = vadd.f32 %v671, %v1066
      %v1068 = vpop.f32.mrb[0].mxu0
      %v1069 = vpop.f32.mrb[0].mxu0
      %v1070 = vadd.f32 %v671, %v1069
      %v1071 = vpop.f32.mrb[0].mxu0
      %1072 = vmatprep.mubr.bf16.mxu0 %v478
      %1073 = vmatmul.mubr.bf16.gmra.mrb[0].mxu0 %v477
      %v1074 = vpop.f32.mrb[0].mxu0
      %v1075 = vadd.f32 %v671, %v1074
      %v1076 = vpop.f32.mrb[0].mxu0
      %v1077 = vpop.f32.mrb[0].mxu0
      %v1078 = vadd.f32 %v671, %v1077
      %v1079 = vpop.f32.mrb[0].mxu0
      %1080 = vmatprep.mubr.bf16.mxu0 %v485
      %1081 = vmatmul.mubr.bf16.gmra.mrb[0].mxu0 %v484
      %v1082 = vpop.f32.mrb[0].mxu0
      %v1083 = vadd.f32 %v671, %v1082
      %v1084 = vpop.f32.mrb[0].mxu0
      %v1085 = vpop.f32.mrb[0].mxu0
      %v1086 = vadd.f32 %v671, %v1085
      %v1087 = vpop.f32.mrb[0].mxu0
      %1088 = vmatprep.mubr.bf16.mxu0 %v492
      %1089 = vmatmul.mubr.bf16.gmra.mrb[0].mxu0 %v491
      %v1090 = vpop.f32.mrb[0].mxu0
      %v1091 = vadd.f32 %v671, %v1090
      %v1092 = vpop.f32.mrb[0].mxu0
      %v1093 = vpop.f32.mrb[0].mxu0
      %v1094 = vadd.f32 %v671, %v1093
      %v1095 = vpop.f32.mrb[0].mxu0
      %1096 = vmatprep.mubr.bf16.mxu0 %v499
      %1097 = vmatmul.mubr.bf16.gmra.mrb[0].mxu0 %v498
      %v1098 = vpop.f32.mrb[0].mxu0
      %v1099 = vadd.f32 %v671, %v1098
      %v1100 = vpop.f32.mrb[0].mxu0
      %v1101 = vpop.f32.mrb[0].mxu0
      %v1102 = vadd.f32 %v671, %v1101
      %v1103 = vpop.f32.mrb[0].mxu0
      %1104 = vmatprep.mubr.bf16.mxu0 %v506
      %1105 = vmatmul.mubr.bf16.gmra.mrb[0].mxu0 %v505
      %v1106 = vpop.f32.mrb[0].mxu0
      %v1107 = vadd.f32 %v671, %v1106
      %v1108 = vpop.f32.mrb[0].mxu0
      %v1109 = vpop.f32.mrb[0].mxu0
      %v1110 = vadd.f32 %v671, %v1109
      %v1111 = vpop.f32.mrb[0].mxu0
      %1112 = vmatprep.mubr.bf16.mxu0 %v513
      %1113 = vmatmul.mubr.bf16.gmra.mrb[0].mxu0 %v512
      %v1114 = vpop.f32.mrb[0].mxu0
      %v1115 = vadd.f32 %v671, %v1114
      %v1116 = vpop.f32.mrb[0].mxu0
      %v1117 = vpop.f32.mrb[0].mxu0
      %v1118 = vadd.f32 %v671, %v1117
      %v1119 = vpop.f32.mrb[0].mxu0
      %1120 = vmatprep.mubr.bf16.mxu0 %v520
      %1121 = vmatmul.mubr.bf16.gmra.mrb[0].mxu0 %v519
      %v1122 = vpop.f32.mrb[0].mxu0
      %v1123 = vadd.f32 %v671, %v1122
      %v1124 = vpop.f32.mrb[0].mxu0
      %v1125 = vpop.f32.mrb[0].mxu0
      %v1126 = vadd.f32 %v671, %v1125
      %v1127 = vpop.f32.mrb[0].mxu0
      %1128 = vmatprep.mubr.bf16.mxu0 %v527
      %1129 = vmatmul.mubr.bf16.gmra.mrb[0].mxu0 %v526
      %v1130 = vpop.f32.mrb[0].mxu0
      %v1131 = vadd.f32 %v671, %v1130
      %v1132 = vpop.f32.mrb[0].mxu0
      %v1133 = vpop.f32.mrb[0].mxu0
      %v1134 = vadd.f32 %v671, %v1133
      %v1135 = vpop.f32.mrb[0].mxu0
      %1136 = vmatprep.mubr.bf16.mxu0 %v534
      %1137 = vmatmul.mubr.bf16.gmra.mrb[0].mxu0 %v533
      %v1138 = vpop.f32.mrb[0].mxu0
      %v1139 = vadd.f32 %v671, %v1138
      %v1140 = vpop.f32.mrb[0].mxu0
      %v1141 = vpop.f32.mrb[0].mxu0
      %v1142 = vadd.f32 %v671, %v1141
      %v1143 = vpop.f32.mrb[0].mxu0
      %1144 = vmatprep.mubr.bf16.mxu0 %v541
      %1145 = vmatmul.mubr.bf16.gmra.mrb[0].mxu0 %v540
      %v1146 = vpop.f32.mrb[0].mxu0
      %v1147 = vadd.f32 %v671, %v1146
      %v1148 = vpop.f32.mrb[0].mxu0
      %v1149 = vpop.f32.mrb[0].mxu0
      %v1150 = vadd.f32 %v671, %v1149
      %v1151 = vpop.f32.mrb[0].mxu0
      %1152 = vmatprep.mubr.bf16.mxu0 %v548
      %1153 = vmatmul.mubr.bf16.gmra.mrb[0].mxu0 %v547
      %v1154 = vpop.f32.mrb[0].mxu0
      %v1155 = vadd.f32 %v671, %v1154
      %v1156 = vpop.f32.mrb[0].mxu0
      %v1157 = vpop.f32.mrb[0].mxu0
      %v1158 = vadd.f32 %v671, %v1157
      %v1159 = vpop.f32.mrb[0].mxu0
      %1160 = vmatprep.mubr.bf16.mxu0 %v555
      %1161 = vmatmul.mubr.bf16.gmra.mrb[0].mxu0 %v554
      %v1162 = vpop.f32.mrb[0].mxu0
      %v1163 = vadd.f32 %v671, %v1162
      %v1164 = vpop.f32.mrb[0].mxu0
      %v1165 = vpop.f32.mrb[0].mxu0
      %v1166 = vadd.f32 %v671, %v1165
      %v1167 = vpop.f32.mrb[0].mxu0
      %1168 = vmatprep.mubr.bf16.mxu0 %v562
      %1169 = vmatmul.mubr.bf16.gmra.mrb[0].mxu0 %v561
      %v1170 = vpop.f32.mrb[0].mxu0
      %v1171 = vadd.f32 %v671, %v1170
      %v1172 = vpop.f32.mrb[0].mxu0
      %v1173 = vpop.f32.mrb[0].mxu0
      %v1174 = vadd.f32 %v671, %v1173
      %v1175 = vpop.f32.mrb[0].mxu0
      %1176 = vdwg.mxu0
      %1177 = vmatprep.subr.bf16.mxu0 0
      %1178 = vmatpush1.bf16.msra.mxu0 %v885
      %1179 = vmatprep.subr.bf16.mxu0 0
      %1180 = vmatpush1.bf16.msra.mxu0 %v886
      %1181 = vmatprep.subr.bf16.mxu0 0
      %1182 = vmatpush1.bf16.msra.mxu0 %v887
      %1183 = vmatprep.subr.bf16.mxu0 0
      %1184 = vmatpush1.bf16.msra.mxu0 %v888
      %1185 = vmatprep.subr.bf16.mxu0 0
      %1186 = vmatpush1.bf16.msra.mxu0 %v889
      %1187 = vmatprep.subr.bf16.mxu0 0
      %1188 = vmatpush1.bf16.msra.mxu0 %v890
      %1189 = vmatprep.subr.bf16.mxu0 0
      %1190 = vmatpush1.bf16.msra.mxu0 %v891
      %1191 = vmatprep.subr.bf16.mxu0 0
      %1192 = vmatpush1.bf16.msra.mxu0 %v892
      %1193 = vmatprep.subr.bf16.mxu0 0
      %1194 = vmatpush1.bf16.msra.mxu0 %v893
      %1195 = vmatprep.subr.bf16.mxu0 0
      %1196 = vmatpush1.bf16.msra.mxu0 %v894
      %1197 = vmatprep.subr.bf16.mxu0 0
      %1198 = vmatpush1.bf16.msra.mxu0 %v895
      %1199 = vmatprep.subr.bf16.mxu0 0
      %1200 = vmatpush1.bf16.msra.mxu0 %v896
      %1201 = vmatprep.subr.bf16.mxu0 0
      %1202 = vmatpush1.bf16.msra.mxu0 %v897
      %1203 = vmatprep.subr.bf16.mxu0 0
      %1204 = vmatpush1.bf16.msra.mxu0 %v898
      %1205 = vmatprep.subr.bf16.mxu0 0
      %1206 = vmatpush1.bf16.msra.mxu0 %v899
      %1207 = vmatprep.subr.bf16.mxu0 0
      %1208 = vmatpush1.bf16.msra.mxu0 %v900
      %1209 = vmatprep.mubr.bf16.mxu0 %v459
      %1210 = vmatmul.mubr.bf16.gmra.mrb[0].mxu0 %v458
      %v1211 = vpop.f32.mrb[0].mxu0
      %v1212 = vadd.f32 %v1051, %v1211
      %v1213 = vpop.f32.mrb[0].mxu0
      %v1214 = vpop.f32.mrb[0].mxu0
      %v1215 = vadd.f32 %v1054, %v1214
      %v1216 = vpop.f32.mrb[0].mxu0
      %1217 = vmatprep.mubr.bf16.mxu0 %v466
      %1218 = vmatmul.mubr.bf16.gmra.mrb[0].mxu0 %v465
      %v1219 = vpop.f32.mrb[0].mxu0
      %v1220 = vadd.f32 %v1059, %v1219
      %v1221 = vpop.f32.mrb[0].mxu0
      %v1222 = vpop.f32.mrb[0].mxu0
      %v1223 = vadd.f32 %v1062, %v1222
      %v1224 = vpop.f32.mrb[0].mxu0
      %1225 = vmatprep.mubr.bf16.mxu0 %v473
      %1226 = vmatmul.mubr.bf16.gmra.mrb[0].mxu0 %v472
      %v1227 = vpop.f32.mrb[0].mxu0
      %v1228 = vadd.f32 %v1067, %v1227
      %v1229 = vpop.f32.mrb[0].mxu0
      %v1230 = vpop.f32.mrb[0].mxu0
      %v1231 = vadd.f32 %v1070, %v1230
      %v1232 = vpop.f32.mrb[0].mxu0
      %1233 = vmatprep.mubr.bf16.mxu0 %v480
      %1234 = vmatmul.mubr.bf16.gmra.mrb[0].mxu0 %v479
      %v1235 = vpop.f32.mrb[0].mxu0
      %v1236 = vadd.f32 %v1075, %v1235
      %v1237 = vpop.f32.mrb[0].mxu0
      %v1238 = vpop.f32.mrb[0].mxu0
      %v1239 = vadd.f32 %v1078, %v1238
      %v1240 = vpop.f32.mrb[0].mxu0
      %1241 = vmatprep.mubr.bf16.mxu0 %v487
      %1242 = vmatmul.mubr.bf16.gmra.mrb[0].mxu0 %v486
      %v1243 = vpop.f32.mrb[0].mxu0
      %v1244 = vadd.f32 %v1083, %v1243
      %v1245 = vpop.f32.mrb[0].mxu0
      %v1246 = vpop.f32.mrb[0].mxu0
      %v1247 = vadd.f32 %v1086, %v1246
      %v1248 = vpop.f32.mrb[0].mxu0
      %1249 = vmatprep.mubr.bf16.mxu0 %v494
      %1250 = vmatmul.mubr.bf16.gmra.mrb[0].mxu0 %v493
      %v1251 = vpop.f32.mrb[0].mxu0
      %v1252 = vadd.f32 %v1091, %v1251
      %v1253 = vpop.f32.mrb[0].mxu0
      %v1254 = vpop.f32.mrb[0].mxu0
      %v1255 = vadd.f32 %v1094, %v1254
      %v1256 = vpop.f32.mrb[0].mxu0
      %1257 = vmatprep.mubr.bf16.mxu0 %v501
      %1258 = vmatmul.mubr.bf16.gmra.mrb[0].mxu0 %v500
      %v1259 = vpop.f32.mrb[0].mxu0
      %v1260 = vadd.f32 %v1099, %v1259
      %v1261 = vpop.f32.mrb[0].mxu0
      %v1262 = vpop.f32.mrb[0].mxu0
      %v1263 = vadd.f32 %v1102, %v1262
      %v1264 = vpop.f32.mrb[0].mxu0
      %1265 = vmatprep.mubr.bf16.mxu0 %v508
      %1266 = vmatmul.mubr.bf16.gmra.mrb[0].mxu0 %v507
      %v1267 = vpop.f32.mrb[0].mxu0
      %v1268 = vadd.f32 %v1107, %v1267
      %v1269 = vpop.f32.mrb[0].mxu0
      %v1270 = vpop.f32.mrb[0].mxu0
      %v1271 = vadd.f32 %v1110, %v1270
      %v1272 = vpop.f32.mrb[0].mxu0
      %1273 = vmatprep.mubr.bf16.mxu0 %v515
      %1274 = vmatmul.mubr.bf16.gmra.mrb[0].mxu0 %v514
      %v1275 = vpop.f32.mrb[0].mxu0
      %v1276 = vadd.f32 %v1115, %v1275
      %v1277 = vpop.f32.mrb[0].mxu0
      %v1278 = vpop.f32.mrb[0].mxu0
      %v1279 = vadd.f32 %v1118, %v1278
      %v1280 = vpop.f32.mrb[0].mxu0
      %1281 = vmatprep.mubr.bf16.mxu0 %v522
      %1282 = vmatmul.mubr.bf16.gmra.mrb[0].mxu0 %v521
      %v1283 = vpop.f32.mrb[0].mxu0
      %v1284 = vadd.f32 %v1123, %v1283
      %v1285 = vpop.f32.mrb[0].mxu0
      %v1286 = vpop.f32.mrb[0].mxu0
      %v1287 = vadd.f32 %v1126, %v1286
      %v1288 = vpop.f32.mrb[0].mxu0
      %1289 = vmatprep.mubr.bf16.mxu0 %v529
      %1290 = vmatmul.mubr.bf16.gmra.mrb[0].mxu0 %v528
      %v1291 = vpop.f32.mrb[0].mxu0
      %v1292 = vadd.f32 %v1131, %v1291
      %v1293 = vpop.f32.mrb[0].mxu0
      %v1294 = vpop.f32.mrb[0].mxu0
      %v1295 = vadd.f32 %v1134, %v1294
      %v1296 = vpop.f32.mrb[0].mxu0
      %1297 = vmatprep.mubr.bf16.mxu0 %v536
      %1298 = vmatmul.mubr.bf16.gmra.mrb[0].mxu0 %v535
      %v1299 = vpop.f32.mrb[0].mxu0
      %v1300 = vadd.f32 %v1139, %v1299
      %v1301 = vpop.f32.mrb[0].mxu0
      %v1302 = vpop.f32.mrb[0].mxu0
      %v1303 = vadd.f32 %v1142, %v1302
      %v1304 = vpop.f32.mrb[0].mxu0
      %1305 = vmatprep.mubr.bf16.mxu0 %v543
      %1306 = vmatmul.mubr.bf16.gmra.mrb[0].mxu0 %v542
      %v1307 = vpop.f32.mrb[0].mxu0
      %v1308 = vadd.f32 %v1147, %v1307
      %v1309 = vpop.f32.mrb[0].mxu0
      %v1310 = vpop.f32.mrb[0].mxu0
      %v1311 = vadd.f32 %v1150, %v1310
      %v1312 = vpop.f32.mrb[0].mxu0
      %1313 = vmatprep.mubr.bf16.mxu0 %v550
      %1314 = vmatmul.mubr.bf16.gmra.mrb[0].mxu0 %v549
      %v1315 = vpop.f32.mrb[0].mxu0
      %v1316 = vadd.f32 %v1155, %v1315
      %v1317 = vpop.f32.mrb[0].mxu0
      %v1318 = vpop.f32.mrb[0].mxu0
      %v1319 = vadd.f32 %v1158, %v1318
      %v1320 = vpop.f32.mrb[0].mxu0
      %1321 = vmatprep.mubr.bf16.mxu0 %v557
      %1322 = vmatmul.mubr.bf16.gmra.mrb[0].mxu0 %v556
      %v1323 = vpop.f32.mrb[0].mxu0
      %v1324 = vadd.f32 %v1163, %v1323
      %v1325 = vpop.f32.mrb[0].mxu0
      %v1326 = vpop.f32.mrb[0].mxu0
      %v1327 = vadd.f32 %v1166, %v1326
      %v1328 = vpop.f32.mrb[0].mxu0
      %1329 = vmatprep.mubr.bf16.mxu0 %v564
      %1330 = vmatmul.mubr.bf16.gmra.mrb[0].mxu0 %v563
      %v1331 = vpop.f32.mrb[0].mxu0
      %v1332 = vadd.f32 %v1171, %v1331
      %v1333 = vpop.f32.mrb[0].mxu0
      %v1334 = vpop.f32.mrb[0].mxu0
      %v1335 = vadd.f32 %v1174, %v1334
      %v1336 = vpop.f32.mrb[0].mxu0
      %1337 = vdwg.mxu0
      %1338 = vmatprep.subr.bf16.mxu0 0
      %1339 = vmatpush1.bf16.msra.mxu0 %v901
      %1340 = vmatprep.subr.bf16.mxu0 0
      %1341 = vmatpush1.bf16.msra.mxu0 %v902
      %1342 = vmatprep.subr.bf16.mxu0 0
      %1343 = vmatpush1.bf16.msra.mxu0 %v903
      %1344 = vmatprep.subr.bf16.mxu0 0
      %1345 = vmatpush1.bf16.msra.mxu0 %v904
      %1346 = vmatprep.subr.bf16.mxu0 0
      %1347 = vmatpush1.bf16.msra.mxu0 %v905
      %1348 = vmatprep.subr.bf16.mxu0 0
      %1349 = vmatpush1.bf16.msra.mxu0 %v906
      %1350 = vmatprep.subr.bf16.mxu0 0
      %1351 = vmatpush1.bf16.msra.mxu0 %v907
      %1352 = vmatprep.subr.bf16.mxu0 0
      %1353 = vmatpush1.bf16.msra.mxu0 %v908
      %1354 = vmatprep.subr.bf16.mxu0 0
      %1355 = vmatpush1.bf16.msra.mxu0 %v909
      %1356 = vmatprep.subr.bf16.mxu0 0
      %1357 = vmatpush1.bf16.msra.mxu0 %v910
      %1358 = vmatprep.subr.bf16.mxu0 0
      %1359 = vmatpush1.bf16.msra.mxu0 %v911
      %1360 = vmatprep.subr.bf16.mxu0 0
      %1361 = vmatpush1.bf16.msra.mxu0 %v912
      %1362 = vmatprep.subr.bf16.mxu0 0
      %1363 = vmatpush1.bf16.msra.mxu0 %v913
      %1364 = vmatprep.subr.bf16.mxu0 0
      %1365 = vmatpush1.bf16.msra.mxu0 %v914
      %1366 = vmatprep.subr.bf16.mxu0 0
      %1367 = vmatpush1.bf16.msra.mxu0 %v915
      %1368 = vmatprep.subr.bf16.mxu0 0
      %1369 = vmatpush1.bf16.msra.mxu0 %v916
      %1370 = vmatprep.mubr.bf16.mxu0 %v461
      %1371 = vmatmul.mubr.bf16.gmra.mrb[0].mxu0 %v460
      %v1372 = vpop.f32.mrb[0].mxu0
      %v1373 = vadd.f32 %v1212, %v1372
      %v1374 = vpop.f32.mrb[0].mxu0
      %v1375 = vpop.f32.mrb[0].mxu0
      %v1376 = vadd.f32 %v1215, %v1375
      %v1377 = vpop.f32.mrb[0].mxu0
      %1378 = vmatprep.mubr.bf16.mxu0 %v468
      %1379 = vmatmul.mubr.bf16.gmra.mrb[0].mxu0 %v467
      %v1380 = vpop.f32.mrb[0].mxu0
      %v1381 = vadd.f32 %v1220, %v1380
      %v1382 = vpop.f32.mrb[0].mxu0
      %v1383 = vpop.f32.mrb[0].mxu0
      %v1384 = vadd.f32 %v1223, %v1383
      %v1385 = vpop.f32.mrb[0].mxu0
      %1386 = vmatprep.mubr.bf16.mxu0 %v475
      %1387 = vmatmul.mubr.bf16.gmra.mrb[0].mxu0 %v474
      %v1388 = vpop.f32.mrb[0].mxu0
      %v1389 = vadd.f32 %v1228, %v1388
      %v1390 = vpop.f32.mrb[0].mxu0
      %v1391 = vpop.f32.mrb[0].mxu0
      %v1392 = vadd.f32 %v1231, %v1391
      %v1393 = vpop.f32.mrb[0].mxu0
      %1394 = vmatprep.mubr.bf16.mxu0 %v482
      %1395 = vmatmul.mubr.bf16.gmra.mrb[0].mxu0 %v481
      %v1396 = vpop.f32.mrb[0].mxu0
      %v1397 = vadd.f32 %v1236, %v1396
      %v1398 = vpop.f32.mrb[0].mxu0
      %v1399 = vpop.f32.mrb[0].mxu0
      %v1400 = vadd.f32 %v1239, %v1399
      %v1401 = vpop.f32.mrb[0].mxu0
      %1402 = vmatprep.mubr.bf16.mxu0 %v489
      %1403 = vmatmul.mubr.bf16.gmra.mrb[0].mxu0 %v488
      %v1404 = vpop.f32.mrb[0].mxu0
      %v1405 = vadd.f32 %v1244, %v1404
      %v1406 = vpop.f32.mrb[0].mxu0
      %v1407 = vpop.f32.mrb[0].mxu0
      %v1408 = vadd.f32 %v1247, %v1407
      %v1409 = vpop.f32.mrb[0].mxu0
      %1410 = vmatprep.mubr.bf16.mxu0 %v496
      %1411 = vmatmul.mubr.bf16.gmra.mrb[0].mxu0 %v495
      %v1412 = vpop.f32.mrb[0].mxu0
      %v1413 = vadd.f32 %v1252, %v1412
      %v1414 = vpop.f32.mrb[0].mxu0
      %v1415 = vpop.f32.mrb[0].mxu0
      %v1416 = vadd.f32 %v1255, %v1415
      %v1417 = vpop.f32.mrb[0].mxu0
      %1418 = vmatprep.mubr.bf16.mxu0 %v503
      %1419 = vmatmul.mubr.bf16.gmra.mrb[0].mxu0 %v502
      %v1420 = vpop.f32.mrb[0].mxu0
      %v1421 = vadd.f32 %v1260, %v1420
      %v1422 = vpop.f32.mrb[0].mxu0
      %v1423 = vpop.f32.mrb[0].mxu0
      %v1424 = vadd.f32 %v1263, %v1423
      %v1425 = vpop.f32.mrb[0].mxu0
      %1426 = vmatprep.mubr.bf16.mxu0 %v510
      %1427 = vmatmul.mubr.bf16.gmra.mrb[0].mxu0 %v509
      %v1428 = vpop.f32.mrb[0].mxu0
      %v1429 = vadd.f32 %v1268, %v1428
      %v1430 = vpop.f32.mrb[0].mxu0
      %v1431 = vpop.f32.mrb[0].mxu0
      %v1432 = vadd.f32 %v1271, %v1431
      %v1433 = vpop.f32.mrb[0].mxu0
      %1434 = vmatprep.mubr.bf16.mxu0 %v517
      %1435 = vmatmul.mubr.bf16.gmra.mrb[0].mxu0 %v516
      %v1436 = vpop.f32.mrb[0].mxu0
      %v1437 = vadd.f32 %v1276, %v1436
      %v1438 = vpop.f32.mrb[0].mxu0
      %v1439 = vpop.f32.mrb[0].mxu0
      %v1440 = vadd.f32 %v1279, %v1439
      %v1441 = vpop.f32.mrb[0].mxu0
      %1442 = vmatprep.mubr.bf16.mxu0 %v524
      %1443 = vmatmul.mubr.bf16.gmra.mrb[0].mxu0 %v523
      %v1444 = vpop.f32.mrb[0].mxu0
      %v1445 = vadd.f32 %v1284, %v1444
      %v1446 = vpop.f32.mrb[0].mxu0
      %v1447 = vpop.f32.mrb[0].mxu0
      %v1448 = vadd.f32 %v1287, %v1447
      %v1449 = vpop.f32.mrb[0].mxu0
      %1450 = vmatprep.mubr.bf16.mxu0 %v531
      %1451 = vmatmul.mubr.bf16.gmra.mrb[0].mxu0 %v530
      %v1452 = vpop.f32.mrb[0].mxu0
      %v1453 = vadd.f32 %v1292, %v1452
      %v1454 = vpop.f32.mrb[0].mxu0
      %v1455 = vpop.f32.mrb[0].mxu0
      %v1456 = vadd.f32 %v1295, %v1455
      %v1457 = vpop.f32.mrb[0].mxu0
      %1458 = vmatprep.mubr.bf16.mxu0 %v538
      %1459 = vmatmul.mubr.bf16.gmra.mrb[0].mxu0 %v537
      %v1460 = vpop.f32.mrb[0].mxu0
      %v1461 = vadd.f32 %v1300, %v1460
      %v1462 = vpop.f32.mrb[0].mxu0
      %v1463 = vpop.f32.mrb[0].mxu0
      %v1464 = vadd.f32 %v1303, %v1463
      %v1465 = vpop.f32.mrb[0].mxu0
      %1466 = vmatprep.mubr.bf16.mxu0 %v545
      %1467 = vmatmul.mubr.bf16.gmra.mrb[0].mxu0 %v544
      %v1468 = vpop.f32.mrb[0].mxu0
      %v1469 = vadd.f32 %v1308, %v1468
      %v1470 = vpop.f32.mrb[0].mxu0
      %v1471 = vpop.f32.mrb[0].mxu0
      %v1472 = vadd.f32 %v1311, %v1471
      %v1473 = vpop.f32.mrb[0].mxu0
      %1474 = vmatprep.mubr.bf16.mxu0 %v552
      %1475 = vmatmul.mubr.bf16.gmra.mrb[0].mxu0 %v551
      %v1476 = vpop.f32.mrb[0].mxu0
      %v1477 = vadd.f32 %v1316, %v1476
      %v1478 = vpop.f32.mrb[0].mxu0
      %v1479 = vpop.f32.mrb[0].mxu0
      %v1480 = vadd.f32 %v1319, %v1479
      %v1481 = vpop.f32.mrb[0].mxu0
      %1482 = vmatprep.mubr.bf16.mxu0 %v559
      %1483 = vmatmul.mubr.bf16.gmra.mrb[0].mxu0 %v558
      %v1484 = vpop.f32.mrb[0].mxu0
      %v1485 = vadd.f32 %v1324, %v1484
      %v1486 = vpop.f32.mrb[0].mxu0
      %v1487 = vpop.f32.mrb[0].mxu0
      %v1488 = vadd.f32 %v1327, %v1487
      %v1489 = vpop.f32.mrb[0].mxu0
      %1490 = vmatprep.mubr.bf16.mxu0 %v566
      %1491 = vmatmul.mubr.bf16.gmra.mrb[0].mxu0 %v565
      %v1492 = vpop.f32.mrb[0].mxu0
      %v1493 = vadd.f32 %v1332, %v1492
      %v1494 = vpop.f32.mrb[0].mxu0
      %v1495 = vpop.f32.mrb[0].mxu0
      %v1496 = vadd.f32 %v1335, %v1495
      %v1497 = vpop.f32.mrb[0].mxu0
      %1498 = vdwg.mxu0
      %1499 = vmatprep.subr.bf16.mxu0 0
      %1500 = vmatpush1.bf16.msra.mxu0 %v917
      %1501 = vmatprep.subr.bf16.mxu0 0
      %1502 = vmatpush1.bf16.msra.mxu0 0
      %1503 = vmatprep.subr.bf16.mxu0 0
      %1504 = vmatpush1.bf16.msra.mxu0 0
      %1505 = vmatprep.subr.bf16.mxu0 0
      %1506 = vmatpush1.bf16.msra.mxu0 0
      %1507 = vmatprep.subr.bf16.mxu0 0
      %1508 = vmatpush1.bf16.msra.mxu0 0
      %1509 = vmatprep.subr.bf16.mxu0 0
      %1510 = vmatpush1.bf16.msra.mxu0 0
      %1511 = vmatprep.subr.bf16.mxu0 0
      %1512 = vmatpush1.bf16.msra.mxu0 0
      %1513 = vmatprep.subr.bf16.mxu0 0
      %1514 = vmatpush1.bf16.msra.mxu0 0
      %1515 = vmatprep.subr.bf16.mxu0 0
      %1516 = vmatpush1.bf16.msra.mxu0 0
      %1517 = vmatprep.subr.bf16.mxu0 0
      %1518 = vmatpush1.bf16.msra.mxu0 0
      %1519 = vmatprep.subr.bf16.mxu0 0
      %1520 = vmatpush1.bf16.msra.mxu0 0
      %1521 = vmatprep.subr.bf16.mxu0 0
      %1522 = vmatpush1.bf16.msra.mxu0 0
      %1523 = vmatprep.subr.bf16.mxu0 0
      %1524 = vmatpush1.bf16.msra.mxu0 0
      %1525 = vmatprep.subr.bf16.mxu0 0
      %1526 = vmatpush1.bf16.msra.mxu0 0
      %1527 = vmatprep.subr.bf16.mxu0 0
      %1528 = vmatpush1.bf16.msra.mxu0 0
      %1529 = vmatprep.subr.bf16.mxu0 0
      %1530 = vmatpush1.bf16.msra.mxu0 0
      %1531 = vmatprep.mubr.bf16.mxu0 0
      %1532 = vmatmul.mubr.bf16.gmra.mrb[0].mxu0 %v969
      %v1533 = vpop.f32.mrb[0].mxu0
      %v1534 = vadd.f32 %v1373, %v1533
      %v1535 = vpop.f32.mrb[0].mxu0
      %v1536 = vpop.f32.mrb[0].mxu0
      %v1537 = vadd.f32 %v1376, %v1536
      %v1538 = vpop.f32.mrb[0].mxu0
      %1539 = vmatprep.mubr.bf16.mxu0 0
      %1540 = vmatmul.mubr.bf16.gmra.mrb[0].mxu0 %v972
      %v1541 = vpop.f32.mrb[0].mxu0
      %v1542 = vadd.f32 %v1381, %v1541
      %v1543 = vpop.f32.mrb[0].mxu0
      %v1544 = vpop.f32.mrb[0].mxu0
      %v1545 = vadd.f32 %v1384, %v1544
      %v1546 = vpop.f32.mrb[0].mxu0
      %1547 = vmatprep.mubr.bf16.mxu0 0
      %1548 = vmatmul.mubr.bf16.gmra.mrb[0].mxu0 %v975
      %v1549 = vpop.f32.mrb[0].mxu0
      %v1550 = vadd.f32 %v1389, %v1549
      %v1551 = vpop.f32.mrb[0].mxu0
      %v1552 = vpop.f32.mrb[0].mxu0
      %v1553 = vadd.f32 %v1392, %v1552
      %v1554 = vpop.f32.mrb[0].mxu0
      %1555 = vmatprep.mubr.bf16.mxu0 0
      %1556 = vmatmul.mubr.bf16.gmra.mrb[0].mxu0 %v978
      %v1557 = vpop.f32.mrb[0].mxu0
      %v1558 = vadd.f32 %v1397, %v1557
      %v1559 = vpop.f32.mrb[0].mxu0
      %v1560 = vpop.f32.mrb[0].mxu0
      %v1561 = vadd.f32 %v1400, %v1560
      %v1562 = vpop.f32.mrb[0].mxu0
      %1563 = vmatprep.mubr.bf16.mxu0 0
      %1564 = vmatmul.mubr.bf16.gmra.mrb[0].mxu0 %v981
      %v1565 = vpop.f32.mrb[0].mxu0
      %v1566 = vadd.f32 %v1405, %v1565
      %v1567 = vpop.f32.mrb[0].mxu0
      %v1568 = vpop.f32.mrb[0].mxu0
      %v1569 = vadd.f32 %v1408, %v1568
      %v1570 = vpop.f32.mrb[0].mxu0
      %1571 = vmatprep.mubr.bf16.mxu0 0
      %1572 = vmatmul.mubr.bf16.gmra.mrb[0].mxu0 %v984
      %v1573 = vpop.f32.mrb[0].mxu0
      %v1574 = vadd.f32 %v1413, %v1573
      %v1575 = vpop.f32.mrb[0].mxu0
      %v1576 = vpop.f32.mrb[0].mxu0
      %v1577 = vadd.f32 %v1416, %v1576
      %v1578 = vpop.f32.mrb[0].mxu0
      %1579 = vmatprep.mubr.bf16.mxu0 0
      %1580 = vmatmul.mubr.bf16.gmra.mrb[0].mxu0 %v987
      %v1581 = vpop.f32.mrb[0].mxu0
      %v1582 = vadd.f32 %v1421, %v1581
      %v1583 = vpop.f32.mrb[0].mxu0
      %v1584 = vpop.f32.mrb[0].mxu0
      %v1585 = vadd.f32 %v1424, %v1584
      %v1586 = vpop.f32.mrb[0].mxu0
      %1587 = vmatprep.mubr.bf16.mxu0 0
      %1588 = vmatmul.mubr.bf16.gmra.mrb[0].mxu0 %v990
      %v1589 = vpop.f32.mrb[0].mxu0
      %v1590 = vadd.f32 %v1429, %v1589
      %v1591 = vpop.f32.mrb[0].mxu0
      %v1592 = vpop.f32.mrb[0].mxu0
      %v1593 = vadd.f32 %v1432, %v1592
      %v1594 = vpop.f32.mrb[0].mxu0
      %1595 = vmatprep.mubr.bf16.mxu0 0
      %1596 = vmatmul.mubr.bf16.gmra.mrb[0].mxu0 %v993
      %v1597 = vpop.f32.mrb[0].mxu0
      %v1598 = vadd.f32 %v1437, %v1597
      %v1599 = vpop.f32.mrb[0].mxu0
      %v1600 = vpop.f32.mrb[0].mxu0
      %v1601 = vadd.f32 %v1440, %v1600
      %v1602 = vpop.f32.mrb[0].mxu0
      %1603 = vmatprep.mubr.bf16.mxu0 0
      %1604 = vmatmul.mubr.bf16.gmra.mrb[0].mxu0 %v996
      %v1605 = vpop.f32.mrb[0].mxu0
      %v1606 = vadd.f32 %v1445, %v1605
      %v1607 = vpop.f32.mrb[0].mxu0
      %v1608 = vpop.f32.mrb[0].mxu0
      %v1609 = vadd.f32 %v1448, %v1608
      %v1610 = vpop.f32.mrb[0].mxu0
      %1611 = vmatprep.mubr.bf16.mxu0 0
      %1612 = vmatmul.mubr.bf16.gmra.mrb[0].mxu0 %v999
      %v1613 = vpop.f32.mrb[0].mxu0
      %v1614 = vadd.f32 %v1453, %v1613
      %v1615 = vpop.f32.mrb[0].mxu0
      %v1616 = vpop.f32.mrb[0].mxu0
      %v1617 = vadd.f32 %v1456, %v1616
      %v1618 = vpop.f32.mrb[0].mxu0
      %1619 = vmatprep.mubr.bf16.mxu0 0
      %1620 = vmatmul.mubr.bf16.gmra.mrb[0].mxu0 %v1002
      %v1621 = vpop.f32.mrb[0].mxu0
      %v1622 = vadd.f32 %v1461, %v1621
      %v1623 = vpop.f32.mrb[0].mxu0
      %v1624 = vpop.f32.mrb[0].mxu0
      %v1625 = vadd.f32 %v1464, %v1624
      %v1626 = vpop.f32.mrb[0].mxu0
      %1627 = vmatprep.mubr.bf16.mxu0 0
      %1628 = vmatmul.mubr.bf16.gmra.mrb[0].mxu0 %v1005
      %v1629 = vpop.f32.mrb[0].mxu0
      %v1630 = vadd.f32 %v1469, %v1629
      %v1631 = vpop.f32.mrb[0].mxu0
      %v1632 = vpop.f32.mrb[0].mxu0
      %v1633 = vadd.f32 %v1472, %v1632
      %v1634 = vpop.f32.mrb[0].mxu0
      %1635 = vmatprep.mubr.bf16.mxu0 0
      %1636 = vmatmul.mubr.bf16.gmra.mrb[0].mxu0 %v1008
      %v1637 = vpop.f32.mrb[0].mxu0
      %v1638 = vadd.f32 %v1477, %v1637
      %v1639 = vpop.f32.mrb[0].mxu0
      %v1640 = vpop.f32.mrb[0].mxu0
      %v1641 = vadd.f32 %v1480, %v1640
      %v1642 = vpop.f32.mrb[0].mxu0
      %1643 = vmatprep.mubr.bf16.mxu0 0
      %1644 = vmatmul.mubr.bf16.gmra.mrb[0].mxu0 %v1011
      %v1645 = vpop.f32.mrb[0].mxu0
      %v1646 = vadd.f32 %v1485, %v1645
      %v1647 = vpop.f32.mrb[0].mxu0
      %v1648 = vpop.f32.mrb[0].mxu0
      %v1649 = vadd.f32 %v1488, %v1648
      %v1650 = vpop.f32.mrb[0].mxu0
      %1651 = vmatprep.mubr.bf16.mxu0 0
      %1652 = vmatmul.mubr.bf16.gmra.mrb[0].mxu0 %v1014
      %v1653 = vpop.f32.mrb[0].mxu0
      %v1654 = vadd.f32 %v1493, %v1653
      %v1655 = vpop.f32.mrb[0].mxu0
      %v1656 = vpop.f32.mrb[0].mxu0
      %v1657 = vadd.f32 %v1496, %v1656
      %v1658 = vpop.f32.mrb[0].mxu0
      %1659 = vdwg.mxu0
      %v1660 = vmax.f32 %v1534, 0.0
      %v1661 = vmax.f32 %v1537, 0.0
      %v1662 = vmax.f32 %v1542, 0.0
      %v1663 = vmax.f32 %v1545, 0.0
      %v1664 = vmax.f32 %v1550, 0.0
      %v1665 = vmax.f32 %v1553, 0.0
      %v1666 = vmax.f32 %v1558, 0.0
      %v1667 = vmax.f32 %v1561, 0.0
      %v1668 = vmax.f32 %v1566, 0.0
      %v1669 = vmax.f32 %v1569, 0.0
      %v1670 = vmax.f32 %v1574, 0.0
      %v1671 = vmax.f32 %v1577, 0.0
      %v1672 = vmax.f32 %v1582, 0.0
      %v1673 = vmax.f32 %v1585, 0.0
      %v1674 = vmax.f32 %v1590, 0.0
      %v1675 = vmax.f32 %v1593, 0.0
      %v1676 = vmax.f32 %v1598, 0.0
      %v1677 = vmax.f32 %v1601, 0.0
      %v1678 = vmax.f32 %v1606, 0.0
      %v1679 = vmax.f32 %v1609, 0.0
      %v1680 = vmax.f32 %v1614, 0.0
      %v1681 = vmax.f32 %v1617, 0.0
      %v1682 = vmax.f32 %v1622, 0.0
      %v1683 = vmax.f32 %v1625, 0.0
      %v1684 = vmax.f32 %v1630, 0.0
      %v1685 = vmax.f32 %v1633, 0.0
      %v1686 = vmax.f32 %v1638, 0.0
      %v1687 = vmax.f32 %v1641, 0.0
      %v1688 = vmax.f32 %v1646, 0.0
      %v1689 = vmax.f32 %v1649, 0.0
      %v1690 = vmax.f32 %v1654, 0.0
      %v1691 = vmax.f32 %v1657, 0.0
      %v1692 = vpack.c.bf16 %v1661, %v1660
      %v1693 = vpack.c.bf16 %v1663, %v1662
      %v1694 = vpack.c.bf16 %v1665, %v1664
      %v1695 = vpack.c.bf16 %v1667, %v1666
      %v1696 = vpack.c.bf16 %v1669, %v1668
      %v1697 = vpack.c.bf16 %v1671, %v1670
      %v1698 = vpack.c.bf16 %v1673, %v1672
      %v1699 = vpack.c.bf16 %v1675, %v1674
      %v1700 = vpack.c.bf16 %v1677, %v1676
      %v1701 = vpack.c.bf16 %v1679, %v1678
      %v1702 = vpack.c.bf16 %v1681, %v1680
      %v1703 = vpack.c.bf16 %v1683, %v1682
      %v1704 = vpack.c.bf16 %v1685, %v1684
      %v1705 = vpack.c.bf16 %v1687, %v1686
      %v1706 = vpack.c.bf16 %v1689, %v1688
      %v1707 = vpack.c.bf16 %v1691, %v1690
      %v1708 = vld [vmem:[%s3] sm:$0xf]
      %v1709 = vld [vmem:[%s3 + $0x4] sm:$0xf]
      %v1710 = vld [vmem:[%s3 + $0x8] sm:$0xf]
      %v1711 = vld [vmem:[%s3 + $0xc] sm:$0xf]
      %v1712 = vld [vmem:[%s3 + $0x10] sm:$0xf]
      %v1713 = vld [vmem:[%s3 + $0x14] sm:$0xf]
      %v1714 = vld [vmem:[%s3 + $0x18] sm:$0xf]
      %v1715 = vld [vmem:[%s3 + $0x1c] sm:$0xf]
      %v1716 = vld [vmem:[%s3 + $0x20] sm:$0xf]
      %v1717 = vld [vmem:[%s3 + $0x24] sm:$0xf]
      %v1718 = vld [vmem:[%s3 + $0x28] sm:$0xf]
      %v1719 = vld [vmem:[%s3 + $0x2c] sm:$0xf]
      %v1720 = vld [vmem:[%s3 + $0x30] sm:$0xf]
      %v1721 = vld [vmem:[%s3 + $0x34] sm:$0xf]
      %v1722 = vld [vmem:[%s3 + $0x38] sm:$0xf]
      %v1723 = vld [vmem:[%s3 + $0x3c] sm:$0xf]
      %v1724 = vld [vmem:[%s4] sm:$0x1]
      %v1726 = vlaneseq
      %v1727 = vshrl.u32 %v1726, 7
      %v1728 = vsub.s32 0, %v1727
      %v1729 = vrot.slane %v1724, %v1728
      %v1747 = vunpack.c.l.b16 %v1708
      %v1748 = vunpack.c.l.b16 %v1709
      %v1749 = vunpack.c.l.b16 %v1710
      %v1750 = vunpack.c.l.b16 %v1711
      %v1751 = vunpack.c.l.b16 %v1712
      %v1752 = vunpack.c.l.b16 %v1713
      %v1753 = vunpack.c.l.b16 %v1714
      %v1754 = vunpack.c.l.b16 %v1715
      %v1755 = vunpack.c.l.b16 %v1716
      %v1756 = vunpack.c.l.b16 %v1717
      %v1757 = vunpack.c.l.b16 %v1718
      %v1758 = vunpack.c.l.b16 %v1719
      %v1759 = vunpack.c.l.b16 %v1720
      %v1760 = vunpack.c.l.b16 %v1721
      %v1761 = vunpack.c.l.b16 %v1722
      %v1762 = vunpack.c.l.b16 %v1723
      %v1763 = vpack.c.b16 %v1748, %v1747
      %v1764 = vpack.c.b16 %v1750, %v1749
      %v1765 = vpack.c.b16 %v1752, %v1751
      %v1766 = vpack.c.b16 %v1754, %v1753
      %v1767 = vpack.c.b16 %v1756, %v1755
      %v1768 = vpack.c.b16 %v1758, %v1757
      %v1769 = vpack.c.b16 %v1760, %v1759
      %v1770 = vpack.c.b16 %v1762, %v1761
      %1779 = vmatprep.subr.bf16.mxu0 0
      %1780 = vmatpush1.bf16.msra.mxu0 %v1763
      %1781 = vmatprep.subr.bf16.mxu0 0
      %1782 = vmatpush1.bf16.msra.mxu0 %v1764
      %1783 = vmatprep.subr.bf16.mxu0 0
      %1784 = vmatpush1.bf16.msra.mxu0 %v1765
      %1785 = vmatprep.subr.bf16.mxu0 0
      %1786 = vmatpush1.bf16.msra.mxu0 %v1766
      %1787 = vmatprep.subr.bf16.mxu0 0
      %1788 = vmatpush1.bf16.msra.mxu0 %v1767
      %1789 = vmatprep.subr.bf16.mxu0 0
      %1790 = vmatpush1.bf16.msra.mxu0 %v1768
      %1791 = vmatprep.subr.bf16.mxu0 0
      %1792 = vmatpush1.bf16.msra.mxu0 %v1769
      %1793 = vmatprep.subr.bf16.mxu0 0
      %1794 = vmatpush1.bf16.msra.mxu0 %v1770
      %1795 = vmatprep.subr.bf16.mxu0 0
      %1796 = vmatpush1.bf16.msra.mxu0 0
      %1797 = vmatprep.subr.bf16.mxu0 0
      %1798 = vmatpush1.bf16.msra.mxu0 0
      %1799 = vmatprep.subr.bf16.mxu0 0
      %1800 = vmatpush1.bf16.msra.mxu0 0
      %1801 = vmatprep.subr.bf16.mxu0 0
      %1802 = vmatpush1.bf16.msra.mxu0 0
      %1803 = vmatprep.subr.bf16.mxu0 0
      %1804 = vmatpush1.bf16.msra.mxu0 0
      %1805 = vmatprep.subr.bf16.mxu0 0
      %1806 = vmatpush1.bf16.msra.mxu0 0
      %1807 = vmatprep.subr.bf16.mxu0 0
      %1808 = vmatpush1.bf16.msra.mxu0 0
      %1809 = vmatprep.subr.bf16.mxu0 0
      %1810 = vmatpush1.bf16.msra.mxu0 0
      %1811 = vmatprep.mubr.bf16.mxu0 0
      %1812 = vmatmul.mubr.bf16.gmra.mrb[0].mxu0 %v1692
      %v1813 = vpop.f32.mrb[0].mxu0
      %v1814 = vadd.f32 %v1729, %v1813
      %v1815 = vpop.f32.mrb[0].mxu0
      %v1816 = vpop.f32.mrb[0].mxu0
      %v1817 = vadd.f32 %v1729, %v1816
      %v1818 = vpop.f32.mrb[0].mxu0
      %1819 = vmatprep.mubr.bf16.mxu0 0
      %1820 = vmatmul.mubr.bf16.gmra.mrb[0].mxu0 %v1693
      %v1821 = vpop.f32.mrb[0].mxu0
      %v1822 = vadd.f32 %v1729, %v1821
      %v1823 = vpop.f32.mrb[0].mxu0
      %v1824 = vpop.f32.mrb[0].mxu0
      %v1825 = vadd.f32 %v1729, %v1824
      %v1826 = vpop.f32.mrb[0].mxu0
      %1827 = vmatprep.mubr.bf16.mxu0 0
      %1828 = vmatmul.mubr.bf16.gmra.mrb[0].mxu0 %v1694
      %v1829 = vpop.f32.mrb[0].mxu0
      %v1830 = vadd.f32 %v1729, %v1829
      %v1831 = vpop.f32.mrb[0].mxu0
      %v1832 = vpop.f32.mrb[0].mxu0
      %v1833 = vadd.f32 %v1729, %v1832
      %v1834 = vpop.f32.mrb[0].mxu0
      %1835 = vmatprep.mubr.bf16.mxu0 0
      %1836 = vmatmul.mubr.bf16.gmra.mrb[0].mxu0 %v1695
      %v1837 = vpop.f32.mrb[0].mxu0
      %v1838 = vadd.f32 %v1729, %v1837
      %v1839 = vpop.f32.mrb[0].mxu0
      %v1840 = vpop.f32.mrb[0].mxu0
      %v1841 = vadd.f32 %v1729, %v1840
      %v1842 = vpop.f32.mrb[0].mxu0
      %1843 = vmatprep.mubr.bf16.mxu0 0
      %1844 = vmatmul.mubr.bf16.gmra.mrb[0].mxu0 %v1696
      %v1845 = vpop.f32.mrb[0].mxu0
      %v1846 = vadd.f32 %v1729, %v1845
      %v1847 = vpop.f32.mrb[0].mxu0
      %v1848 = vpop.f32.mrb[0].mxu0
      %v1849 = vadd.f32 %v1729, %v1848
      %v1850 = vpop.f32.mrb[0].mxu0
      %1851 = vmatprep.mubr.bf16.mxu0 0
      %1852 = vmatmul.mubr.bf16.gmra.mrb[0].mxu0 %v1697
      %v1853 = vpop.f32.mrb[0].mxu0
      %v1854 = vadd.f32 %v1729, %v1853
      %v1855 = vpop.f32.mrb[0].mxu0
      %v1856 = vpop.f32.mrb[0].mxu0
      %v1857 = vadd.f32 %v1729, %v1856
      %v1858 = vpop.f32.mrb[0].mxu0
      %1859 = vmatprep.mubr.bf16.mxu0 0
      %1860 = vmatmul.mubr.bf16.gmra.mrb[0].mxu0 %v1698
      %v1861 = vpop.f32.mrb[0].mxu0
      %v1862 = vadd.f32 %v1729, %v1861
      %v1863 = vpop.f32.mrb[0].mxu0
      %v1864 = vpop.f32.mrb[0].mxu0
      %v1865 = vadd.f32 %v1729, %v1864
      %v1866 = vpop.f32.mrb[0].mxu0
      %1867 = vmatprep.mubr.bf16.mxu0 0
      %1868 = vmatmul.mubr.bf16.gmra.mrb[0].mxu0 %v1699
      %v1869 = vpop.f32.mrb[0].mxu0
      %v1870 = vadd.f32 %v1729, %v1869
      %v1871 = vpop.f32.mrb[0].mxu0
      %v1872 = vpop.f32.mrb[0].mxu0
      %v1873 = vadd.f32 %v1729, %v1872
      %v1874 = vpop.f32.mrb[0].mxu0
      %1875 = vmatprep.mubr.bf16.mxu0 0
      %1876 = vmatmul.mubr.bf16.gmra.mrb[0].mxu0 %v1700
      %v1877 = vpop.f32.mrb[0].mxu0
      %v1878 = vadd.f32 %v1729, %v1877
      %v1879 = vpop.f32.mrb[0].mxu0
      %v1880 = vpop.f32.mrb[0].mxu0
      %v1881 = vadd.f32 %v1729, %v1880
      %v1882 = vpop.f32.mrb[0].mxu0
      %1883 = vmatprep.mubr.bf16.mxu0 0
      %1884 = vmatmul.mubr.bf16.gmra.mrb[0].mxu0 %v1701
      %v1885 = vpop.f32.mrb[0].mxu0
      %v1886 = vadd.f32 %v1729, %v1885
      %v1887 = vpop.f32.mrb[0].mxu0
      %v1888 = vpop.f32.mrb[0].mxu0
      %v1889 = vadd.f32 %v1729, %v1888
      %v1890 = vpop.f32.mrb[0].mxu0
      %1891 = vmatprep.mubr.bf16.mxu0 0
      %1892 = vmatmul.mubr.bf16.gmra.mrb[0].mxu0 %v1702
      %v1893 = vpop.f32.mrb[0].mxu0
      %v1894 = vadd.f32 %v1729, %v1893
      %v1895 = vpop.f32.mrb[0].mxu0
      %v1896 = vpop.f32.mrb[0].mxu0
      %v1897 = vadd.f32 %v1729, %v1896
      %v1898 = vpop.f32.mrb[0].mxu0
      %1899 = vmatprep.mubr.bf16.mxu0 0
      %1900 = vmatmul.mubr.bf16.gmra.mrb[0].mxu0 %v1703
      %v1901 = vpop.f32.mrb[0].mxu0
      %v1902 = vadd.f32 %v1729, %v1901
      %v1903 = vpop.f32.mrb[0].mxu0
      %v1904 = vpop.f32.mrb[0].mxu0
      %v1905 = vadd.f32 %v1729, %v1904
      %v1906 = vpop.f32.mrb[0].mxu0
      %1907 = vmatprep.mubr.bf16.mxu0 0
      %1908 = vmatmul.mubr.bf16.gmra.mrb[0].mxu0 %v1704
      %v1909 = vpop.f32.mrb[0].mxu0
      %v1910 = vadd.f32 %v1729, %v1909
      %v1911 = vpop.f32.mrb[0].mxu0
      %v1912 = vpop.f32.mrb[0].mxu0
      %v1913 = vadd.f32 %v1729, %v1912
      %v1914 = vpop.f32.mrb[0].mxu0
      %1915 = vmatprep.mubr.bf16.mxu0 0
      %1916 = vmatmul.mubr.bf16.gmra.mrb[0].mxu0 %v1705
      %v1917 = vpop.f32.mrb[0].mxu0
      %v1918 = vadd.f32 %v1729, %v1917
      %v1919 = vpop.f32.mrb[0].mxu0
      %v1920 = vpop.f32.mrb[0].mxu0
      %v1921 = vadd.f32 %v1729, %v1920
      %v1922 = vpop.f32.mrb[0].mxu0
      %1923 = vmatprep.mubr.bf16.mxu0 0
      %1924 = vmatmul.mubr.bf16.gmra.mrb[0].mxu0 %v1706
      %v1925 = vpop.f32.mrb[0].mxu0
      %v1926 = vadd.f32 %v1729, %v1925
      %v1927 = vpop.f32.mrb[0].mxu0
      %v1928 = vpop.f32.mrb[0].mxu0
      %v1929 = vadd.f32 %v1729, %v1928
      %v1930 = vpop.f32.mrb[0].mxu0
      %1931 = vmatprep.mubr.bf16.mxu0 0
      %1932 = vmatmul.mubr.bf16.gmra.mrb[0].mxu0 %v1707
      %v1933 = vpop.f32.mrb[0].mxu0
      %v1934 = vadd.f32 %v1729, %v1933
      %v1935 = vpop.f32.mrb[0].mxu0
      %v1936 = vpop.f32.mrb[0].mxu0
      %v1937 = vadd.f32 %v1729, %v1936
      %v1938 = vpop.f32.mrb[0].mxu0
      %1939 = vdwg.mxu0
      %1940 = vmax.xlane.f32.xlu0 %v1814
      %v1941 = vpop.xlane.xlu0 %1940
      %1942 = vmax.xlane.f32.xlu0 %v1817
      %v1943 = vpop.xlane.xlu0 %1942
      %1944 = vmax.xlane.f32.xlu0 %v1822
      %v1945 = vpop.xlane.xlu0 %1944
      %1946 = vmax.xlane.f32.xlu0 %v1825
      %v1947 = vpop.xlane.xlu0 %1946
      %1948 = vmax.xlane.f32.xlu0 %v1830
      %v1949 = vpop.xlane.xlu0 %1948
      %1950 = vmax.xlane.f32.xlu0 %v1833
      %v1951 = vpop.xlane.xlu0 %1950
      %1952 = vmax.xlane.f32.xlu0 %v1838
      %v1953 = vpop.xlane.xlu0 %1952
      %1954 = vmax.xlane.f32.xlu0 %v1841
      %v1955 = vpop.xlane.xlu0 %1954
      %1956 = vmax.xlane.f32.xlu0 %v1846
      %v1957 = vpop.xlane.xlu0 %1956
      %1958 = vmax.xlane.f32.xlu0 %v1849
      %v1959 = vpop.xlane.xlu0 %1958
      %1960 = vmax.xlane.f32.xlu0 %v1854
      %v1961 = vpop.xlane.xlu0 %1960
      %1962 = vmax.xlane.f32.xlu0 %v1857
      %v1963 = vpop.xlane.xlu0 %1962
      %1964 = vmax.xlane.f32.xlu0 %v1862
      %v1965 = vpop.xlane.xlu0 %1964
      %1966 = vmax.xlane.f32.xlu0 %v1865
      %v1967 = vpop.xlane.xlu0 %1966
      %1968 = vmax.xlane.f32.xlu0 %v1870
      %v1969 = vpop.xlane.xlu0 %1968
      %1970 = vmax.xlane.f32.xlu0 %v1873
      %v1971 = vpop.xlane.xlu0 %1970
      %1972 = vmax.xlane.f32.xlu0 %v1878
      %v1973 = vpop.xlane.xlu0 %1972
      %1974 = vmax.xlane.f32.xlu0 %v1881
      %v1975 = vpop.xlane.xlu0 %1974
      %1976 = vmax.xlane.f32.xlu0 %v1886
      %v1977 = vpop.xlane.xlu0 %1976
      %1978 = vmax.xlane.f32.xlu0 %v1889
      %v1979 = vpop.xlane.xlu0 %1978
      %1980 = vmax.xlane.f32.xlu0 %v1894
      %v1981 = vpop.xlane.xlu0 %1980
      %1982 = vmax.xlane.f32.xlu0 %v1897
      %v1983 = vpop.xlane.xlu0 %1982
      %1984 = vmax.xlane.f32.xlu0 %v1902
      %v1985 = vpop.xlane.xlu0 %1984
      %1986 = vmax.xlane.f32.xlu0 %v1905
      %v1987 = vpop.xlane.xlu0 %1986
      %1988 = vmax.xlane.f32.xlu0 %v1910
      %v1989 = vpop.xlane.xlu0 %1988
      %1990 = vmax.xlane.f32.xlu0 %v1913
      %v1991 = vpop.xlane.xlu0 %1990
      %1992 = vmax.xlane.f32.xlu0 %v1918
      %v1993 = vpop.xlane.xlu0 %1992
      %1994 = vmax.xlane.f32.xlu0 %v1921
      %v1995 = vpop.xlane.xlu0 %1994
      %1996 = vmax.xlane.f32.xlu0 %v1926
      %v1997 = vpop.xlane.xlu0 %1996
      %1998 = vmax.xlane.f32.xlu0 %v1929
      %v1999 = vpop.xlane.xlu0 %1998
      %2000 = vmax.xlane.f32.xlu0 %v1934
      %v2001 = vpop.xlane.xlu0 %2000
      %2002 = vmax.xlane.f32.xlu0 %v1937
      %v2003 = vpop.xlane.xlu0 %2002
      %v2004 = vsub.f32 %v1814, %v1941
      %v2005 = vsub.f32 %v1817, %v1943
      %v2006 = vsub.f32 %v1822, %v1945
      %v2007 = vsub.f32 %v1825, %v1947
      %v2008 = vsub.f32 %v1830, %v1949
      %v2009 = vsub.f32 %v1833, %v1951
      %v2010 = vsub.f32 %v1838, %v1953
      %v2011 = vsub.f32 %v1841, %v1955
      %v2012 = vsub.f32 %v1846, %v1957
      %v2013 = vsub.f32 %v1849, %v1959
      %v2014 = vsub.f32 %v1854, %v1961
      %v2015 = vsub.f32 %v1857, %v1963
      %v2016 = vsub.f32 %v1862, %v1965
      %v2017 = vsub.f32 %v1865, %v1967
      %v2018 = vsub.f32 %v1870, %v1969
      %v2019 = vsub.f32 %v1873, %v1971
      %v2020 = vsub.f32 %v1878, %v1973
      %v2021 = vsub.f32 %v1881, %v1975
      %v2022 = vsub.f32 %v1886, %v1977
      %v2023 = vsub.f32 %v1889, %v1979
      %v2024 = vsub.f32 %v1894, %v1981
      %v2025 = vsub.f32 %v1897, %v1983
      %v2026 = vsub.f32 %v1902, %v1985
      %v2027 = vsub.f32 %v1905, %v1987
      %v2028 = vsub.f32 %v1910, %v1989
      %v2029 = vsub.f32 %v1913, %v1991
      %v2030 = vsub.f32 %v1918, %v1993
      %v2031 = vsub.f32 %v1921, %v1995
      %v2032 = vsub.f32 %v1926, %v1997
      %v2033 = vsub.f32 %v1929, %v1999
      %v2034 = vsub.f32 %v1934, %v2001
      %v2035 = vsub.f32 %v1937, %v2003
      %v2036 = vmul.f32 %v2004, 1.442695
      %v2037 = vpow.pop %v2036
      %v2038 = vmul.f32 %v2005, 1.442695
      %v2039 = vpow.pop %v2038
      %v2040 = vmul.f32 %v2006, 1.442695
      %v2041 = vpow.pop %v2040
      %v2042 = vmul.f32 %v2007, 1.442695
      %v2043 = vpow.pop %v2042
      %v2044 = vmul.f32 %v2008, 1.442695
      %v2045 = vpow.pop %v2044
      %v2046 = vmul.f32 %v2009, 1.442695
      %v2047 = vpow.pop %v2046
      %v2048 = vmul.f32 %v2010, 1.442695
      %v2049 = vpow.pop %v2048
      %v2050 = vmul.f32 %v2011, 1.442695
      %v2051 = vpow.pop %v2050
      %v2052 = vmul.f32 %v2012, 1.442695
      %v2053 = vpow.pop %v2052
      %v2054 = vmul.f32 %v2013, 1.442695
      %v2055 = vpow.pop %v2054
      %v2056 = vmul.f32 %v2014, 1.442695
      %v2057 = vpow.pop %v2056
      %v2058 = vmul.f32 %v2015, 1.442695
      %v2059 = vpow.pop %v2058
      %v2060 = vmul.f32 %v2016, 1.442695
      %v2061 = vpow.pop %v2060
      %v2062 = vmul.f32 %v2017, 1.442695
      %v2063 = vpow.pop %v2062
      %v2064 = vmul.f32 %v2018, 1.442695
      %v2065 = vpow.pop %v2064
      %v2066 = vmul.f32 %v2019, 1.442695
      %v2067 = vpow.pop %v2066
      %v2068 = vmul.f32 %v2020, 1.442695
      %v2069 = vpow.pop %v2068
      %v2070 = vmul.f32 %v2021, 1.442695
      %v2071 = vpow.pop %v2070
      %v2072 = vmul.f32 %v2022, 1.442695
      %v2073 = vpow.pop %v2072
      %v2074 = vmul.f32 %v2023, 1.442695
      %v2075 = vpow.pop %v2074
      %v2076 = vmul.f32 %v2024, 1.442695
      %v2077 = vpow.pop %v2076
      %v2078 = vmul.f32 %v2025, 1.442695
      %v2079 = vpow.pop %v2078
      %v2080 = vmul.f32 %v2026, 1.442695
      %v2081 = vpow.pop %v2080
      %v2082 = vmul.f32 %v2027, 1.442695
      %v2083 = vpow.pop %v2082
      %v2084 = vmul.f32 %v2028, 1.442695
      %v2085 = vpow.pop %v2084
      %v2086 = vmul.f32 %v2029, 1.442695
      %v2087 = vpow.pop %v2086
      %v2088 = vmul.f32 %v2030, 1.442695
      %v2089 = vpow.pop %v2088
      %v2090 = vmul.f32 %v2031, 1.442695
      %v2091 = vpow.pop %v2090
      %v2092 = vmul.f32 %v2032, 1.442695
      %v2093 = vpow.pop %v2092
      %v2094 = vmul.f32 %v2033, 1.442695
      %v2095 = vpow.pop %v2094
      %v2096 = vmul.f32 %v2034, 1.442695
      %v2097 = vpow.pop %v2096
      %v2098 = vmul.f32 %v2035, 1.442695
      %v2099 = vpow.pop %v2098
      %2100 = vadd.xlane.f32.xlu0 %v2037
      %v2101 = vpop.xlane.xlu0 %2100
      %2102 = vadd.xlane.f32.xlu0 %v2039
      %v2103 = vpop.xlane.xlu0 %2102
      %2104 = vadd.xlane.f32.xlu0 %v2041
      %v2105 = vpop.xlane.xlu0 %2104
      %2106 = vadd.xlane.f32.xlu0 %v2043
      %v2107 = vpop.xlane.xlu0 %2106
      %2108 = vadd.xlane.f32.xlu0 %v2045
      %v2109 = vpop.xlane.xlu0 %2108
      %2110 = vadd.xlane.f32.xlu0 %v2047
      %v2111 = vpop.xlane.xlu0 %2110
      %2112 = vadd.xlane.f32.xlu0 %v2049
      %v2113 = vpop.xlane.xlu0 %2112
      %2114 = vadd.xlane.f32.xlu0 %v2051
      %v2115 = vpop.xlane.xlu0 %2114
      %2116 = vadd.xlane.f32.xlu0 %v2053
      %v2117 = vpop.xlane.xlu0 %2116
      %2118 = vadd.xlane.f32.xlu0 %v2055
      %v2119 = vpop.xlane.xlu0 %2118
      %2120 = vadd.xlane.f32.xlu0 %v2057
      %v2121 = vpop.xlane.xlu0 %2120
      %2122 = vadd.xlane.f32.xlu0 %v2059
      %v2123 = vpop.xlane.xlu0 %2122
      %2124 = vadd.xlane.f32.xlu0 %v2061
      %v2125 = vpop.xlane.xlu0 %2124
      %2126 = vadd.xlane.f32.xlu0 %v2063
      %v2127 = vpop.xlane.xlu0 %2126
      %2128 = vadd.xlane.f32.xlu0 %v2065
      %v2129 = vpop.xlane.xlu0 %2128
      %2130 = vadd.xlane.f32.xlu0 %v2067
      %v2131 = vpop.xlane.xlu0 %2130
      %2132 = vadd.xlane.f32.xlu0 %v2069
      %v2133 = vpop.xlane.xlu0 %2132
      %2134 = vadd.xlane.f32.xlu0 %v2071
      %v2135 = vpop.xlane.xlu0 %2134
      %2136 = vadd.xlane.f32.xlu0 %v2073
      %v2137 = vpop.xlane.xlu0 %2136
      %2138 = vadd.xlane.f32.xlu0 %v2075
      %v2139 = vpop.xlane.xlu0 %2138
      %2140 = vadd.xlane.f32.xlu0 %v2077
      %v2141 = vpop.xlane.xlu0 %2140
      %2142 = vadd.xlane.f32.xlu0 %v2079
      %v2143 = vpop.xlane.xlu0 %2142
      %2144 = vadd.xlane.f32.xlu0 %v2081
      %v2145 = vpop.xlane.xlu0 %2144
      %2146 = vadd.xlane.f32.xlu0 %v2083
      %v2147 = vpop.xlane.xlu0 %2146
      %2148 = vadd.xlane.f32.xlu0 %v2085
      %v2149 = vpop.xlane.xlu0 %2148
      %2150 = vadd.xlane.f32.xlu0 %v2087
      %v2151 = vpop.xlane.xlu0 %2150
      %2152 = vadd.xlane.f32.xlu0 %v2089
      %v2153 = vpop.xlane.xlu0 %2152
      %2154 = vadd.xlane.f32.xlu0 %v2091
      %v2155 = vpop.xlane.xlu0 %2154
      %2156 = vadd.xlane.f32.xlu0 %v2093
      %v2157 = vpop.xlane.xlu0 %2156
      %2158 = vadd.xlane.f32.xlu0 %v2095
      %v2159 = vpop.xlane.xlu0 %2158
      %2160 = vadd.xlane.f32.xlu0 %v2097
      %v2161 = vpop.xlane.xlu0 %2160
      %2162 = vadd.xlane.f32.xlu0 %v2099
      %v2163 = vpop.xlane.xlu0 %2162
      %v2164 = vrcp.pop %v2101
      %v2165 = vrcp.pop %v2103
      %v2166 = vrcp.pop %v2105
      %v2167 = vrcp.pop %v2107
      %v2168 = vrcp.pop %v2109
      %v2169 = vrcp.pop %v2111
      %v2170 = vrcp.pop %v2113
      %v2171 = vrcp.pop %v2115
      %v2172 = vrcp.pop %v2117
      %v2173 = vrcp.pop %v2119
      %v2174 = vrcp.pop %v2121
      %v2175 = vrcp.pop %v2123
      %v2176 = vrcp.pop %v2125
      %v2177 = vrcp.pop %v2127
      %v2178 = vrcp.pop %v2129
      %v2179 = vrcp.pop %v2131
      %v2180 = vrcp.pop %v2133
      %v2181 = vrcp.pop %v2135
      %v2182 = vrcp.pop %v2137
      %v2183 = vrcp.pop %v2139
      %v2184 = vrcp.pop %v2141
      %v2185 = vrcp.pop %v2143
      %v2186 = vrcp.pop %v2145
      %v2187 = vrcp.pop %v2147
      %v2188 = vrcp.pop %v2149
      %v2189 = vrcp.pop %v2151
      %v2190 = vrcp.pop %v2153
      %v2191 = vrcp.pop %v2155
      %v2192 = vrcp.pop %v2157
      %v2193 = vrcp.pop %v2159
      %v2194 = vrcp.pop %v2161
      %v2195 = vrcp.pop %v2163
      %v2196 = vmul.f32 %v2101, %v2164
      %v2197 = vmul.f32 %v2103, %v2165
      %v2198 = vmul.f32 %v2105, %v2166
      %v2199 = vmul.f32 %v2107, %v2167
      %v2200 = vmul.f32 %v2109, %v2168
      %v2201 = vmul.f32 %v2111, %v2169
      %v2202 = vmul.f32 %v2113, %v2170
      %v2203 = vmul.f32 %v2115, %v2171
      %v2204 = vmul.f32 %v2117, %v2172
      %v2205 = vmul.f32 %v2119, %v2173
      %v2206 = vmul.f32 %v2121, %v2174
      %v2207 = vmul.f32 %v2123, %v2175
      %v2208 = vmul.f32 %v2125, %v2176
      %v2209 = vmul.f32 %v2127, %v2177
      %v2210 = vmul.f32 %v2129, %v2178
      %v2211 = vmul.f32 %v2131, %v2179
      %v2212 = vmul.f32 %v2133, %v2180
      %v2213 = vmul.f32 %v2135, %v2181
      %v2214 = vmul.f32 %v2137, %v2182
      %v2215 = vmul.f32 %v2139, %v2183
      %v2216 = vmul.f32 %v2141, %v2184
      %v2217 = vmul.f32 %v2143, %v2185
      %v2218 = vmul.f32 %v2145, %v2186
      %v2219 = vmul.f32 %v2147, %v2187
      %v2220 = vmul.f32 %v2149, %v2188
      %v2221 = vmul.f32 %v2151, %v2189
      %v2222 = vmul.f32 %v2153, %v2190
      %v2223 = vmul.f32 %v2155, %v2191
      %v2224 = vmul.f32 %v2157, %v2192
      %v2225 = vmul.f32 %v2159, %v2193
      %v2226 = vmul.f32 %v2161, %v2194
      %v2227 = vmul.f32 %v2163, %v2195
      %v2228 = vsub.f32 2.0, %v2196
      %v2229 = vsub.f32 2.0, %v2197
      %v2230 = vsub.f32 2.0, %v2198
      %v2231 = vsub.f32 2.0, %v2199
      %v2232 = vsub.f32 2.0, %v2200
      %v2233 = vsub.f32 2.0, %v2201
      %v2234 = vsub.f32 2.0, %v2202
      %v2235 = vsub.f32 2.0, %v2203
      %v2236 = vsub.f32 2.0, %v2204
      %v2237 = vsub.f32 2.0, %v2205
      %v2238 = vsub.f32 2.0, %v2206
      %v2239 = vsub.f32 2.0, %v2207
      %v2240 = vsub.f32 2.0, %v2208
      %v2241 = vsub.f32 2.0, %v2209
      %v2242 = vsub.f32 2.0, %v2210
      %v2243 = vsub.f32 2.0, %v2211
      %v2244 = vsub.f32 2.0, %v2212
      %v2245 = vsub.f32 2.0, %v2213
      %v2246 = vsub.f32 2.0, %v2214
      %v2247 = vsub.f32 2.0, %v2215
      %v2248 = vsub.f32 2.0, %v2216
      %v2249 = vsub.f32 2.0, %v2217
      %v2250 = vsub.f32 2.0, %v2218
      %v2251 = vsub.f32 2.0, %v2219
      %v2252 = vsub.f32 2.0, %v2220
      %v2253 = vsub.f32 2.0, %v2221
      %v2254 = vsub.f32 2.0, %v2222
      %v2255 = vsub.f32 2.0, %v2223
      %v2256 = vsub.f32 2.0, %v2224
      %v2257 = vsub.f32 2.0, %v2225
      %v2258 = vsub.f32 2.0, %v2226
      %v2259 = vsub.f32 2.0, %v2227
      %v2260 = vmul.f32 %v2164, %v2228
      %v2261 = vmul.f32 %v2165, %v2229
      %v2262 = vmul.f32 %v2166, %v2230
      %v2263 = vmul.f32 %v2167, %v2231
      %v2264 = vmul.f32 %v2168, %v2232
      %v2265 = vmul.f32 %v2169, %v2233
      %v2266 = vmul.f32 %v2170, %v2234
      %v2267 = vmul.f32 %v2171, %v2235
      %v2268 = vmul.f32 %v2172, %v2236
      %v2269 = vmul.f32 %v2173, %v2237
      %v2270 = vmul.f32 %v2174, %v2238
      %v2271 = vmul.f32 %v2175, %v2239
      %v2272 = vmul.f32 %v2176, %v2240
      %v2273 = vmul.f32 %v2177, %v2241
      %v2274 = vmul.f32 %v2178, %v2242
      %v2275 = vmul.f32 %v2179, %v2243
      %v2276 = vmul.f32 %v2180, %v2244
      %v2277 = vmul.f32 %v2181, %v2245
      %v2278 = vmul.f32 %v2182, %v2246
      %v2279 = vmul.f32 %v2183, %v2247
      %v2280 = vmul.f32 %v2184, %v2248
      %v2281 = vmul.f32 %v2185, %v2249
      %v2282 = vmul.f32 %v2186, %v2250
      %v2283 = vmul.f32 %v2187, %v2251
      %v2284 = vmul.f32 %v2188, %v2252
      %v2285 = vmul.f32 %v2189, %v2253
      %v2286 = vmul.f32 %v2190, %v2254
      %v2287 = vmul.f32 %v2191, %v2255
      %v2288 = vmul.f32 %v2192, %v2256
      %v2289 = vmul.f32 %v2193, %v2257
      %v2290 = vmul.f32 %v2194, %v2258
      %v2291 = vmul.f32 %v2195, %v2259
      %v2292 = vmul.f32 %v2037, %v2260
      %v2293 = vmul.f32 %v2039, %v2261
      %v2294 = vmul.f32 %v2041, %v2262
      %v2295 = vmul.f32 %v2043, %v2263
      %v2296 = vmul.f32 %v2045, %v2264
      %v2297 = vmul.f32 %v2047, %v2265
      %v2298 = vmul.f32 %v2049, %v2266
      %v2299 = vmul.f32 %v2051, %v2267
      %v2300 = vmul.f32 %v2053, %v2268
      %v2301 = vmul.f32 %v2055, %v2269
      %v2302 = vmul.f32 %v2057, %v2270
      %v2303 = vmul.f32 %v2059, %v2271
      %v2304 = vmul.f32 %v2061, %v2272
      %v2305 = vmul.f32 %v2063, %v2273
      %v2306 = vmul.f32 %v2065, %v2274
      %v2307 = vmul.f32 %v2067, %v2275
      %v2308 = vmul.f32 %v2069, %v2276
      %v2309 = vmul.f32 %v2071, %v2277
      %v2310 = vmul.f32 %v2073, %v2278
      %v2311 = vmul.f32 %v2075, %v2279
      %v2312 = vmul.f32 %v2077, %v2280
      %v2313 = vmul.f32 %v2079, %v2281
      %v2314 = vmul.f32 %v2081, %v2282
      %v2315 = vmul.f32 %v2083, %v2283
      %v2316 = vmul.f32 %v2085, %v2284
      %v2317 = vmul.f32 %v2087, %v2285
      %v2318 = vmul.f32 %v2089, %v2286
      %v2319 = vmul.f32 %v2091, %v2287
      %v2320 = vmul.f32 %v2093, %v2288
      %v2321 = vmul.f32 %v2095, %v2289
      %v2322 = vmul.f32 %v2097, %v2290
      %v2323 = vmul.f32 %v2099, %v2291
      %2324 = vst [vmem:[%s229] sm:$0xff] %v2292
      %2325 = vst [vmem:[%s229 + $0x8] sm:$0xff] %v2293
      %2326 = vst [vmem:[%s229 + $0x10] sm:$0xff] %v2294
      %2327 = vst [vmem:[%s229 + $0x18] sm:$0xff] %v2295
      %2328 = vst [vmem:[%s229 + $0x20] sm:$0xff] %v2296
      %2329 = vst [vmem:[%s229 + $0x28] sm:$0xff] %v2297
      %2330 = vst [vmem:[%s229 + $0x30] sm:$0xff] %v2298
      %2331 = vst [vmem:[%s229 + $0x38] sm:$0xff] %v2299
      %2332 = vst [vmem:[%s229 + $0x40] sm:$0xff] %v2300
      %2333 = vst [vmem:[%s229 + $0x48] sm:$0xff] %v2301
      %2334 = vst [vmem:[%s229 + $0x50] sm:$0xff] %v2302
      %2335 = vst [vmem:[%s229 + $0x58] sm:$0xff] %v2303
      %2336 = vst [vmem:[%s229 + $0x60] sm:$0xff] %v2304
      %2337 = vst [vmem:[%s229 + $0x68] sm:$0xff] %v2305
      %2338 = vst [vmem:[%s229 + $0x70] sm:$0xff] %v2306
      %2339 = vst [vmem:[%s229 + $0x78] sm:$0xff] %v2307
      %2340 = vst [vmem:[%s229 + $0x80] sm:$0xff] %v2308
      %2341 = vst [vmem:[%s229 + $0x88] sm:$0xff] %v2309
      %2342 = vst [vmem:[%s229 + $0x90] sm:$0xff] %v2310
      %2343 = vst [vmem:[%s229 + $0x98] sm:$0xff] %v2311
      %2344 = vst [vmem:[%s229 + $0xa0] sm:$0xff] %v2312
      %2345 = vst [vmem:[%s229 + $0xa8] sm:$0xff] %v2313
      %2346 = vst [vmem:[%s229 + $0xb0] sm:$0xff] %v2314
      %2347 = vst [vmem:[%s229 + $0xb8] sm:$0xff] %v2315
      %2348 = vst [vmem:[%s229 + $0xc0] sm:$0xff] %v2316
      %2349 = vst [vmem:[%s229 + $0xc8] sm:$0xff] %v2317
      %2350 = vst [vmem:[%s229 + $0xd0] sm:$0xff] %v2318
      %2351 = vst [vmem:[%s229 + $0xd8] sm:$0xff] %v2319
      %2352 = vst [vmem:[%s229 + $0xe0] sm:$0xff] %v2320
      %2353 = vst [vmem:[%s229 + $0xe8] sm:$0xff] %v2321
      %2354 = vst [vmem:[%s229 + $0xf0] sm:$0xff] %v2322
      %2355 = vst [vmem:[%s229 + $0xf8] sm:$0xff] %v2323
      %s2356 = smul.u32 32, %s16
      %p2357 = scmp.lt.s32.totalorder %s2356, 63
      %s2358 = scalar_select %p2357, %s2356, 63
      %s2359 = smul.addr %s2358, 8
      %s2360 = scalar_lea.vmem %s5, %s2359
      // Predicated region
      $region41: #{mnist_forward.1} parent=39 // pred_check
        %p2361 = pneg %p144
      $region42: #{mnist_forward.1} parent=39 // pred_check_branch
        %2363 = sbr.rel (%p2361) target = $region44
      $region43: #{mnist_forward.1} parent=39 // pred_region
        %s2364 = smul.u32 32, %s16
      $region44: #{mnist_forward.1} parent=39 // pred_fallthru
        _
    $region40: #{mnist_forward.1} parent=5 // pred_fallthru
      _
    %p2365 = scmp.le.s32.totalorder 2, %s11
    // Predicated region
    $region45: #{mnist_forward.1} parent=5 // pred_check
      %p2366 = pneg %p2365
    $region46: #{mnist_forward.1} parent=5 // pred_check_branch
      %2368 = sbr.rel (%p2366) target = $region48
    $region47: #{mnist_forward.1} parent=5 // pred_region
      %s2369 = ssub.s32 %s11, 2
      // Predicated region
      $region49: #{mnist_forward.1} parent=47 // pred_check
        %p2370 = pneg %p150
      $region50: #{mnist_forward.1} parent=47 // pred_check_branch
        %2372 = sbr.rel (%p2370) target = $region52
      $region51: #{mnist_forward.1} parent=47 // pred_region
        %s2373 = smul.u32 32, %s17
        %p2374 = scmp.lt.s32.totalorder %s2373, 63
        %s2375 = scalar_select %p2374, %s2373, 63
        %s2376 = smul.addr %s2375, 8
        %s2377 = scalar_lea.vmem %s5, %s2376
      $region52: #{mnist_forward.1} parent=47 // pred_fallthru
        _
    $region48: #{mnist_forward.1} parent=5 // pred_fallthru
      _
  $region6: #{mnist_forward.1} parent=0 // loop_footer
    %s15 = sadd.s32 1, %s11
  $region7: #{mnist_forward.1} parent=0 // loop_footer_branch
    %10 = sbr.rel target = $region3
  $region8: #{mnist_forward.1} parent=0 // loop_exit
    _

</llo_original>
